<compile_context>
chip_gen: v6e
topology: v6e:2x2x1
jax: 0.10.0
libtpu: 0.0.40
codegen_flags: <defaults>
</compile_context>

<pallas_src>
import functools

import jax
import jax.numpy as jnp
from jax import lax
from jax.experimental import pallas as pl
from jax.experimental.pallas import tpu as pltpu


# --------------------------------------------------------------------------
# BlockSpec helpers
# --------------------------------------------------------------------------
def _per_b(*inner):
    n = len(inner)
    return pl.BlockSpec((None,) + inner, lambda b: (b,) + (0,) * n)


def _shared(shape):
    n = len(shape)
    return pl.BlockSpec(shape, lambda i: (0,) * n)


# --------------------------------------------------------------------------
# Kernel 1: vote generation
#   relu(bn1(conv1(x))) -> relu(bn2(conv2(.))) -> conv3(.) (fused xyz+feat head)
#   -> add offsets/residuals -> L2-normalize the feature lanes.
# Input / output are single lane-dense (rows, 3+C) slabs: [xyz | feat].
# --------------------------------------------------------------------------
def _vote_gen_kernel(xf_ref,
                     w1_ref, s1_ref, t1_ref,
                     w2_ref, s2_ref, t2_ref,
                     w3_ref, b3_ref,
                     out_ref):
    xf = xf_ref[...]                                   # (R, 3+C) f32: [xyz | feat]
    x = xf[:, 3:]                                      # (R, C) seed features

    h = jnp.dot(x.astype(jnp.bfloat16), w1_ref[...],
                preferred_element_type=jnp.float32)
    h = jnp.maximum(h * s1_ref[...] + t1_ref[...], 0.0)           # conv1+bn1+relu
    h = jnp.dot(h.astype(jnp.bfloat16), w2_ref[...],
                preferred_element_type=jnp.float32)
    h = jnp.maximum(h * s2_ref[...] + t2_ref[...], 0.0)           # conv2+bn2+relu
    net = jnp.dot(h.astype(jnp.bfloat16), w3_ref[...],
                  preferred_element_type=jnp.float32) + b3_ref[...]  # (R, 3+C)

    v = xf + net                                       # [xyz+off | feat+res]
    col = lax.broadcasted_iota(jnp.int32, v.shape, 1)
    feat_mask = col >= 3
    sq = jnp.where(feat_mask, v * v, 0.0)
    # TODO(synk): no epsilon in the norm, matching the torch reference (NaN if vf == 0).
    inv = lax.rsqrt(jnp.sum(sq, axis=-1, keepdims=True))
    out_ref[...] = jnp.where(feat_mask, v * inv, v)    # normalize feature lanes only


def _vote_gen_call(xf_flat, p):
    R, W = xf_flat.shape                               # W = 3 + C
    C = W - 3
    RB = 128 if R % 128 == 0 else R                    # 128-row tiles fill a v5e MXU pass
    assert R % RB == 0
    in_specs = [pl.BlockSpec((RB, W), lambda i: (i, 0)),
                _shared((C, C)), _shared((1, C)), _shared((1, C)),
                _shared((C, C)), _shared((1, C)), _shared((1, C)),
                _shared((C, W)), _shared((1, W))]
    return pl.pallas_call(
        _vote_gen_kernel,
        out_shape=jax.ShapeDtypeStruct((R, W), jnp.float32),
        grid=(R // RB,),
        in_specs=in_specs,
        out_specs=pl.BlockSpec((RB, W), lambda i: (i, 0)),
        compiler_params=pltpu.CompilerParams(dimension_semantics=("parallel",)),
    )(xf_flat,
      p['w1'], p['s1'], p['t1'],
      p['w2'], p['s2'], p['t2'],
      p['w3'], p['b3'])


# --------------------------------------------------------------------------
# Kernel 2: PointnetSAModuleVotes shared MLP + max pooling over nsample.
# Grouped input per batch is a flattened (K*S, 3+C) slab with k-major rows
# (row = k*S + s).  Each MLP layer is ONE matmul over all K*S rows; the
# max-pool over K is K-1 elementwise maxima on sublane-aligned (S, C) slices.
# --------------------------------------------------------------------------
def _agg_mlp_kernel(g_ref,
                    w1_ref, s1_ref, t1_ref,
                    w2_ref, s2_ref, t2_ref,
                    w3_ref, s3_ref, t3_ref,
                    out_ref):
    S, _ = out_ref.shape
    K = g_ref.shape[0] // S

    h = jnp.dot(g_ref[...], w1_ref[...], preferred_element_type=jnp.float32)
    h = jnp.maximum(h * s1_ref[...] + t1_ref[...], 0.0)
    h = jnp.dot(h.astype(jnp.bfloat16), w2_ref[...], preferred_element_type=jnp.float32)
    h = jnp.maximum(h * s2_ref[...] + t2_ref[...], 0.0)
    h = jnp.dot(h.astype(jnp.bfloat16), w3_ref[...], preferred_element_type=jnp.float32)
    h = jnp.maximum(h * s3_ref[...] + t3_ref[...], 0.0)           # (K*S, C)

    acc = h[:S]
    for k in range(1, K):                                         # K-1 VPU maxima
        acc = jnp.maximum(acc, h[k * S:(k + 1) * S])
    out_ref[...] = acc                                            # (S, C)


def _agg_mlp_call(grouped_flat, p, num_proposal):
    B, KS, Cin = grouped_flat.shape
    H1 = p['aw1'].shape[1]
    H2 = p['aw2'].shape[1]
    C = p['aw3'].shape[1]
    S = num_proposal
    assert KS % S == 0
    in_specs = [_per_b(KS, Cin),
                _shared((Cin, H1)), _shared((1, H1)), _shared((1, H1)),
                _shared((H1, H2)), _shared((1, H2)), _shared((1, H2)),
                _shared((H2, C)), _shared((1, C)), _shared((1, C))]
    return pl.pallas_call(
        _agg_mlp_kernel,
        out_shape=jax.ShapeDtypeStruct((B, S, C), jnp.float32),
        grid=(B,),
        in_specs=in_specs,
        out_specs=_per_b(S, C),
        compiler_params=pltpu.CompilerParams(dimension_semantics=("parallel",)),
    )(grouped_flat,
      p['aw1'], p['as1'], p['at1'],
      p['aw2'], p['as2'], p['at2'],
      p['aw3'], p['as3'], p['at3'])


# --------------------------------------------------------------------------
# Plain-JAX glue: furthest point sampling, ball query, grouping gather.
# TODO(synk): data-dependent gather/FPS/ball-query are kept in XLA; an in-kernel
# DMA/scalar-prefetch gather would remove the grouped-tensor HBM round-trip.
# --------------------------------------------------------------------------
def _furthest_point_sample(xyz, npoint):
    """xyz: (B, N, 3) -> (B, npoint) int32. Matches CUDA FPS (idx[0] = 0)."""
    def one(x):
        N = x.shape[0]
        inds0 = jnp.zeros((npoint,), jnp.int32)
        dist0 = jnp.full((N,), 1e10, jnp.float32)

        def body(j, carry):
            inds, dist = carry
            last = x[inds[j - 1]]
            d = jnp.sum((x - last) ** 2, axis=-1)
            dist = jnp.minimum(dist, d)
            nxt = jnp.argmax(dist).astype(jnp.int32)
            return inds.at[j].set(nxt), dist

        inds, _ = lax.fori_loop(1, npoint, body, (inds0, dist0))
        return inds

    return jax.vmap(one)(xyz)


def _ball_query(new_xyz, xyz, radius, nsample):
    """First `nsample` points (in index order) within `radius`; pad with the
    first hit — matches the pointnet2 CUDA ball_query semantics."""
    N = xyz.shape[1]
    d2 = jnp.sum((new_xyz[:, :, None, :] - xyz[:, None, :, :]) ** 2, axis=-1)
    within = d2 < radius * radius
    cand = jnp.where(within, jnp.arange(N, dtype=jnp.int32)[None, None, :], N)
    cand = jnp.sort(cand, axis=-1)[:, :, :nsample]
    first = cand[:, :, :1]
    return jnp.where(cand >= N, first, cand)                       # (B, S, K)


def votenet_decoder_forward(seed_xyz, seed_features, params,
                            num_proposal, nsample, radius):
    """seed_xyz: (B, N, 3); seed_features: (B, C, N) [PyTorch layout]."""
    B, N, _ = seed_xyz.shape
    C = seed_features.shape[1]
    feat_nc = jnp.transpose(seed_features, (0, 2, 1))              # (B, N, C)

    # ---- Stage 1 (Pallas): vote generation + feature L2-normalization ----
    xf_flat = jnp.concatenate([seed_xyz, feat_nc], axis=-1).reshape(B * N, 3 + C)
    vote_out = _vote_gen_call(xf_flat, params).reshape(B, N, 3 + C)
    vote_xyz = vote_out[:, :, :3]                                  # (B, N, 3)
    vote_feat = vote_out[:, :, 3:]                                 # (B, N, C)

    # ---- FPS + ball query + grouping (plain JAX glue) ----
    fps_inds = _furthest_point_sample(vote_xyz, num_proposal)      # (B, S)
    b_ix = jnp.arange(B)[:, None]
    new_xyz = vote_xyz[b_ix, fps_inds]                             # (B, S, 3)

    idx = _ball_query(new_xyz, vote_xyz, radius, nsample)          # (B, S, K)
    idx_ks = jnp.transpose(idx, (0, 2, 1))                         # (B, K, S) -> k-major rows
    b_ix3 = jnp.arange(B)[:, None, None]
    g_xyz = (vote_xyz[b_ix3, idx_ks] - new_xyz[:, None, :, :]) / radius   # (B,K,S,3)
    g_feat = vote_feat[b_ix3, idx_ks]                                     # (B,K,S,C)
    grouped = jnp.concatenate([g_xyz, g_feat], axis=-1)                   # (B,K,S,3+C)
    grouped_flat = grouped.reshape(B, nsample * num_proposal, 3 + C)
    grouped_flat = grouped_flat.astype(jnp.bfloat16)               # bf16 activations for MXU

    # ---- Stage 2 (Pallas): shared MLP + max pool over nsample ----
    feat_snc = _agg_mlp_call(grouped_flat, params, num_proposal)   # (B, S, C)
    features = jnp.transpose(feat_snc, (0, 2, 1))                  # (B, C, S) PyTorch order
    return new_xyz, features


# --------------------------------------------------------------------------
# Deterministic parameter initialization (synthetic, no checkpoint).
# Weights stored in bf16 (matmul operands); BN scale/bias folded in f32.
# --------------------------------------------------------------------------
def init_params(key, C, cin_agg, h1=128, h2=128):
    eps = 1e-5
    keys = iter(jax.random.split(key, 40))

    def conv(fan_in, fan_out):
        bound = 1.0 / float(fan_in) ** 0.5
        w = jax.random.uniform(next(keys), (fan_in, fan_out), jnp.float32, -bound, bound)
        b = jax.random.uniform(next(keys), (fan_out,), jnp.float32, -bound, bound)
        return w, b

    def bn_fold(dim):
        gamma = 1.0 + 0.1 * jax.random.normal(next(keys), (dim,), jnp.float32)
        beta = 0.1 * jax.random.normal(next(keys), (dim,), jnp.float32)
        rm = 0.1 * jax.random.normal(next(keys), (dim,), jnp.float32)
        rv = 0.9 + 0.2 * jax.random.uniform(next(keys), (dim,), jnp.float32)
        s = gamma / jnp.sqrt(rv + eps)
        t = beta - rm * s
        return s, t

    p = {}
    w1, b1 = conv(C, C); s1, t1 = bn_fold(C)
    p['w1'], p['s1'], p['t1'] = w1.astype(jnp.bfloat16), s1[None, :], (b1 * s1 + t1)[None, :]
    w2, b2 = conv(C, C); s2, t2 = bn_fold(C)
    p['w2'], p['s2'], p['t2'] = w2.astype(jnp.bfloat16), s2[None, :], (b2 * s2 + t2)[None, :]
    w3, b3 = conv(C, 3 + C)                           # fused conv3 head (xyz + features)
    p['w3'], p['b3'] = w3.astype(jnp.bfloat16), b3[None, :]

    aw1, ab1 = conv(cin_agg, h1); as1, at1 = bn_fold(h1)
    p['aw1'], p['as1'], p['at1'] = aw1.astype(jnp.bfloat16), as1[None, :], (ab1 * as1 + at1)[None, :]
    aw2, ab2 = conv(h1, h2); as2, at2 = bn_fold(h2)
    p['aw2'], p['as2'], p['at2'] = aw2.astype(jnp.bfloat16), as2[None, :], (ab2 * as2 + at2)[None, :]
    aw3, ab3 = conv(h2, C); as3, at3 = bn_fold(C)
    p['aw3'], p['as3'], p['at3'] = aw3.astype(jnp.bfloat16), as3[None, :], (ab3 * as3 + at3)[None, :]
    return p


if __name__ == "__main__":
    B, N, C = 2, 64, 32          # batch, num_seed, decoder_feature_dim (small)
    NUM_PROPOSAL, NSAMPLE, RADIUS = 16, 8, 0.3
    VOTE_FACTOR = 1

    key = jax.random.PRNGKey(0)
    kx, kf, kp = jax.random.split(key, 3)
    seed_xyz = jax.random.uniform(kx, (B, N, 3), jnp.float32)            # (B, N, 3)
    seed_features = jax.random.normal(kf, (B, C, N), jnp.float32) * 0.5  # (B, C, N) torch layout

    params = init_params(kp, C, cin_agg=3 + C)

    fwd = jax.jit(functools.partial(votenet_decoder_forward,
                                    params=params,
                                    num_proposal=NUM_PROPOSAL,
                                    nsample=NSAMPLE,
                                    radius=RADIUS))
    xyz, features = fwd(seed_xyz, seed_features)
    jax.block_until_ready((xyz, features))

    assert xyz.shape == (B, NUM_PROPOSAL, 3)
    assert features.shape == (B, C, NUM_PROPOSAL)
    assert bool(jnp.all(jnp.isfinite(xyz))) and bool(jnp.all(jnp.isfinite(features)))
    print("KERNEL_OK")
</pallas_src>

<mosaic_0001>
module attributes {stable_mosaic.version = 11 : i64} {
  func.func @_vote_gen_kernel(%arg0: i32, %arg1: memref<128x35xf32, #tpu.memory_space<vmem>>, %arg2: memref<32x32xbf16, #tpu.memory_space<vmem>>, %arg3: memref<1x32xf32, #tpu.memory_space<vmem>>, %arg4: memref<1x32xf32, #tpu.memory_space<vmem>>, %arg5: memref<32x32xbf16, #tpu.memory_space<vmem>>, %arg6: memref<1x32xf32, #tpu.memory_space<vmem>>, %arg7: memref<1x32xf32, #tpu.memory_space<vmem>>, %arg8: memref<32x35xbf16, #tpu.memory_space<vmem>>, %arg9: memref<1x35xf32, #tpu.memory_space<vmem>>, %arg10: memref<128x35xf32, #tpu.memory_space<vmem>>) attributes {dimension_semantics = [#tpu.dimension_semantics<parallel>], iteration_bounds = array<i64: 1>, scalar_prefetch = 0 : i64, scratch_operands = 0 : i64, tpu.core_type = #tpu.core_type<tc>, window_params = [{transform_indices = @transform_0, window_bounds = array<i64: 128, 35>}, {pipeline_mode = #tpu.pipeline_mode<synchronous>, transform_indices = @transform_1, window_bounds = array<i64: 32, 32>}, {pipeline_mode = #tpu.pipeline_mode<synchronous>, transform_indices = @transform_2, window_bounds = array<i64: 1, 32>}, {pipeline_mode = #tpu.pipeline_mode<synchronous>, transform_indices = @transform_3, window_bounds = array<i64: 1, 32>}, {pipeline_mode = #tpu.pipeline_mode<synchronous>, transform_indices = @transform_4, window_bounds = array<i64: 32, 32>}, {pipeline_mode = #tpu.pipeline_mode<synchronous>, transform_indices = @transform_5, window_bounds = array<i64: 1, 32>}, {pipeline_mode = #tpu.pipeline_mode<synchronous>, transform_indices = @transform_6, window_bounds = array<i64: 1, 32>}, {pipeline_mode = #tpu.pipeline_mode<synchronous>, transform_indices = @transform_7, window_bounds = array<i64: 32, 35>}, {pipeline_mode = #tpu.pipeline_mode<synchronous>, transform_indices = @transform_8, window_bounds = array<i64: 1, 35>}, {transform_indices = @transform_9, window_bounds = array<i64: 128, 35>}]} {
    %c0 = arith.constant 0 : index
    %c0_0 = arith.constant 0 : index
    %0 = vector.load %arg1[%c0, %c0_0] : memref<128x35xf32, #tpu.memory_space<vmem>>, vector<128x35xf32>
    %1 = vector.extract_strided_slice %0 {offsets = [0, 3], sizes = [128, 32], strides = [1, 1]} : vector<128x35xf32> to vector<128x32xf32>
    %2 = arith.truncf %1 : vector<128x32xf32> to vector<128x32xbf16>
    %c0_1 = arith.constant 0 : index
    %c0_2 = arith.constant 0 : index
    %3 = vector.load %arg2[%c0_1, %c0_2] : memref<32x32xbf16, #tpu.memory_space<vmem>>, vector<32x32xbf16>
    %cst = arith.constant dense<0.000000e+00> : vector<128x32xf32>
    %4 = tpu.matmul %2, %3, %cst {dimension_numbers = #tpu.dot_dimension_numbers<[1], [0], [0], [1], [0, 0, 1, 1], [], []>} : vector<128x32xbf16>, vector<32x32xbf16>, vector<128x32xf32> -> vector<128x32xf32>
    %c0_3 = arith.constant 0 : index
    %c0_4 = arith.constant 0 : index
    %5 = vector.load %arg3[%c0_3, %c0_4] : memref<1x32xf32, #tpu.memory_space<vmem>>, vector<1x32xf32>
    %6 = vector.broadcast %5 : vector<1x32xf32> to vector<128x32xf32>
    %7 = arith.mulf %4, %6 : vector<128x32xf32>
    %c0_5 = arith.constant 0 : index
    %c0_6 = arith.constant 0 : index
    %8 = vector.load %arg4[%c0_5, %c0_6] : memref<1x32xf32, #tpu.memory_space<vmem>>, vector<1x32xf32>
    %9 = vector.broadcast %8 : vector<1x32xf32> to vector<128x32xf32>
    %10 = arith.addf %7, %9 : vector<128x32xf32>
    %cst_7 = arith.constant 0.000000e+00 : f32
    %11 = vector.broadcast %cst_7 : f32 to vector<128x32xf32>
    %12 = arith.maximumf %10, %11 : vector<128x32xf32>
    %13 = arith.truncf %12 : vector<128x32xf32> to vector<128x32xbf16>
    %c0_8 = arith.constant 0 : index
    %c0_9 = arith.constant 0 : index
    %14 = vector.load %arg5[%c0_8, %c0_9] : memref<32x32xbf16, #tpu.memory_space<vmem>>, vector<32x32xbf16>
    %cst_10 = arith.constant dense<0.000000e+00> : vector<128x32xf32>
    %15 = tpu.matmul %13, %14, %cst_10 {dimension_numbers = #tpu.dot_dimension_numbers<[1], [0], [0], [1], [0, 0, 1, 1], [], []>} : vector<128x32xbf16>, vector<32x32xbf16>, vector<128x32xf32> -> vector<128x32xf32>
    %c0_11 = arith.constant 0 : index
    %c0_12 = arith.constant 0 : index
    %16 = vector.load %arg6[%c0_11, %c0_12] : memref<1x32xf32, #tpu.memory_space<vmem>>, vector<1x32xf32>
    %17 = vector.broadcast %16 : vector<1x32xf32> to vector<128x32xf32>
    %18 = arith.mulf %15, %17 : vector<128x32xf32>
    %c0_13 = arith.constant 0 : index
    %c0_14 = arith.constant 0 : index
    %19 = vector.load %arg7[%c0_13, %c0_14] : memref<1x32xf32, #tpu.memory_space<vmem>>, vector<1x32xf32>
    %20 = vector.broadcast %19 : vector<1x32xf32> to vector<128x32xf32>
    %21 = arith.addf %18, %20 : vector<128x32xf32>
    %cst_15 = arith.constant 0.000000e+00 : f32
    %22 = vector.broadcast %cst_15 : f32 to vector<128x32xf32>
    %23 = arith.maximumf %21, %22 : vector<128x32xf32>
    %24 = arith.truncf %23 : vector<128x32xf32> to vector<128x32xbf16>
    %c0_16 = arith.constant 0 : index
    %c0_17 = arith.constant 0 : index
    %25 = vector.load %arg8[%c0_16, %c0_17] : memref<32x35xbf16, #tpu.memory_space<vmem>>, vector<32x35xbf16>
    %cst_18 = arith.constant dense<0.000000e+00> : vector<128x35xf32>
    %26 = tpu.matmul %24, %25, %cst_18 {dimension_numbers = #tpu.dot_dimension_numbers<[1], [0], [0], [1], [0, 0, 1, 1], [], []>} : vector<128x32xbf16>, vector<32x35xbf16>, vector<128x35xf32> -> vector<128x35xf32>
    %c0_19 = arith.constant 0 : index
    %c0_20 = arith.constant 0 : index
    %27 = vector.load %arg9[%c0_19, %c0_20] : memref<1x35xf32, #tpu.memory_space<vmem>>, vector<1x35xf32>
    %28 = vector.broadcast %27 : vector<1x35xf32> to vector<128x35xf32>
    %29 = arith.addf %26, %28 : vector<128x35xf32>
    %30 = arith.addf %0, %29 : vector<128x35xf32>
    %31 = tpu.iota {dimensions = array<i32: 1>} : vector<128x35xi32>
    %c3_i32 = arith.constant 3 : i32
    %32 = vector.broadcast %c3_i32 : i32 to vector<128x35xi32>
    %33 = arith.cmpi sge, %31, %32 : vector<128x35xi32>
    %34 = arith.mulf %30, %30 : vector<128x35xf32>
    %cst_21 = arith.constant 0.000000e+00 : f32
    %35 = vector.broadcast %cst_21 : f32 to vector<128x35xf32>
    %36 = arith.select %33, %34, %35 : vector<128x35xi1>, vector<128x35xf32>
    %cst_22 = arith.constant dense<0.000000e+00> : vector<128xf32>
    %37 = vector.multi_reduction <add>, %36, %cst_22 [1] : vector<128x35xf32> to vector<128xf32>
    %38 = vector.shape_cast %37 : vector<128xf32> to vector<128x1xf32>
    %39 = math.rsqrt %38 : vector<128x1xf32>
    %40 = vector.broadcast %39 : vector<128x1xf32> to vector<128x35xf32>
    %41 = arith.mulf %30, %40 : vector<128x35xf32>
    %42 = arith.select %33, %41, %30 : vector<128x35xi1>, vector<128x35xf32>
    %c0_23 = arith.constant 0 : index
    %c0_24 = arith.constant 0 : index
    %43 = vector.load %arg10[%c0_23, %c0_24] : memref<128x35xf32, #tpu.memory_space<vmem>>, vector<128x35xf32>
    tpu.vector_store %arg10[%c0_23, %c0_24], %42 {strides = array<i32>} : memref<128x35xf32, #tpu.memory_space<vmem>>, vector<128x35xf32>,
    return
  }
  func.func @transform_0(%arg0: i32) -> (i32, i32) {
    %c0_i32 = arith.constant 0 : i32
    %c0_i32_0 = arith.constant 0 : i32
    return %arg0, %c0_i32 : i32, i32
  }
  func.func @transform_1(%arg0: i32) -> (i32, i32) {
    %c0_i32 = arith.constant 0 : i32
    %c0_i32_0 = arith.constant 0 : i32
    %c0_i32_1 = arith.constant 0 : i32
    return %c0_i32, %c0_i32_0 : i32, i32
  }
  func.func @transform_2(%arg0: i32) -> (i32, i32) {
    %c0_i32 = arith.constant 0 : i32
    %c0_i32_0 = arith.constant 0 : i32
    %c0_i32_1 = arith.constant 0 : i32
    return %c0_i32, %c0_i32_0 : i32, i32
  }
  func.func @transform_3(%arg0: i32) -> (i32, i32) {
    %c0_i32 = arith.constant 0 : i32
    %c0_i32_0 = arith.constant 0 : i32
    %c0_i32_1 = arith.constant 0 : i32
    return %c0_i32, %c0_i32_0 : i32, i32
  }
  func.func @transform_4(%arg0: i32) -> (i32, i32) {
    %c0_i32 = arith.constant 0 : i32
    %c0_i32_0 = arith.constant 0 : i32
    %c0_i32_1 = arith.constant 0 : i32
    return %c0_i32, %c0_i32_0 : i32, i32
  }
  func.func @transform_5(%arg0: i32) -> (i32, i32) {
    %c0_i32 = arith.constant 0 : i32
    %c0_i32_0 = arith.constant 0 : i32
    %c0_i32_1 = arith.constant 0 : i32
    return %c0_i32, %c0_i32_0 : i32, i32
  }
  func.func @transform_6(%arg0: i32) -> (i32, i32) {
    %c0_i32 = arith.constant 0 : i32
    %c0_i32_0 = arith.constant 0 : i32
    %c0_i32_1 = arith.constant 0 : i32
    return %c0_i32, %c0_i32_0 : i32, i32
  }
  func.func @transform_7(%arg0: i32) -> (i32, i32) {
    %c0_i32 = arith.constant 0 : i32
    %c0_i32_0 = arith.constant 0 : i32
    %c0_i32_1 = arith.constant 0 : i32
    return %c0_i32, %c0_i32_0 : i32, i32
  }
  func.func @transform_8(%arg0: i32) -> (i32, i32) {
    %c0_i32 = arith.constant 0 : i32
    %c0_i32_0 = arith.constant 0 : i32
    %c0_i32_1 = arith.constant 0 : i32
    return %c0_i32, %c0_i32_0 : i32, i32
  }
  func.func @transform_9(%arg0: i32) -> (i32, i32) {
    %c0_i32 = arith.constant 0 : i32
    %c0_i32_0 = arith.constant 0 : i32
    return %arg0, %c0_i32 : i32, i32
  }
}

module attributes {stable_mosaic.version = 11 : i64} {
  func.func @_agg_mlp_kernel(%arg0: i32, %arg1: memref<1x128x35xbf16, #tpu.memory_space<vmem>>, %arg2: memref<35x128xbf16, #tpu.memory_space<vmem>>, %arg3: memref<1x128xf32, #tpu.memory_space<vmem>>, %arg4: memref<1x128xf32, #tpu.memory_space<vmem>>, %arg5: memref<128x128xbf16, #tpu.memory_space<vmem>>, %arg6: memref<1x128xf32, #tpu.memory_space<vmem>>, %arg7: memref<1x128xf32, #tpu.memory_space<vmem>>, %arg8: memref<128x32xbf16, #tpu.memory_space<vmem>>, %arg9: memref<1x32xf32, #tpu.memory_space<vmem>>, %arg10: memref<1x32xf32, #tpu.memory_space<vmem>>, %arg11: memref<1x16x32xf32, #tpu.memory_space<vmem>>) attributes {dimension_semantics = [#tpu.dimension_semantics<parallel>], iteration_bounds = array<i64: 2>, scalar_prefetch = 0 : i64, scratch_operands = 0 : i64, tpu.core_type = #tpu.core_type<tc>, window_params = [{transform_indices = @transform_0, window_bounds = array<i64: 1, 128, 35>}, {pipeline_mode = #tpu.pipeline_mode<synchronous>, transform_indices = @transform_1, window_bounds = array<i64: 35, 128>}, {pipeline_mode = #tpu.pipeline_mode<synchronous>, transform_indices = @transform_2, window_bounds = array<i64: 1, 128>}, {pipeline_mode = #tpu.pipeline_mode<synchronous>, transform_indices = @transform_3, window_bounds = array<i64: 1, 128>}, {pipeline_mode = #tpu.pipeline_mode<synchronous>, transform_indices = @transform_4, window_bounds = array<i64: 128, 128>}, {pipeline_mode = #tpu.pipeline_mode<synchronous>, transform_indices = @transform_5, window_bounds = array<i64: 1, 128>}, {pipeline_mode = #tpu.pipeline_mode<synchronous>, transform_indices = @transform_6, window_bounds = array<i64: 1, 128>}, {pipeline_mode = #tpu.pipeline_mode<synchronous>, transform_indices = @transform_7, window_bounds = array<i64: 128, 32>}, {pipeline_mode = #tpu.pipeline_mode<synchronous>, transform_indices = @transform_8, window_bounds = array<i64: 1, 32>}, {pipeline_mode = #tpu.pipeline_mode<synchronous>, transform_indices = @transform_9, window_bounds = array<i64: 1, 32>}, {transform_indices = @transform_10, window_bounds = array<i64: 1, 16, 32>}]} {
    %c0 = arith.constant 0 : index
    %c0_0 = arith.constant 0 : index
    %c0_1 = arith.constant 0 : index
    %0 = vector.load %arg1[%c0, %c0_0, %c0_1] : memref<1x128x35xbf16, #tpu.memory_space<vmem>>, vector<1x128x35xbf16>
    %1 = vector.shape_cast %0 : vector<1x128x35xbf16> to vector<128x35xbf16>
    %c0_2 = arith.constant 0 : index
    %c0_3 = arith.constant 0 : index
    %2 = vector.load %arg2[%c0_2, %c0_3] : memref<35x128xbf16, #tpu.memory_space<vmem>>, vector<35x128xbf16>
    %cst = arith.constant dense<0.000000e+00> : vector<128x128xf32>
    %3 = tpu.matmul %1, %2, %cst {dimension_numbers = #tpu.dot_dimension_numbers<[1], [0], [0], [1], [0, 0, 1, 1], [], []>} : vector<128x35xbf16>, vector<35x128xbf16>, vector<128x128xf32> -> vector<128x128xf32>
    %c0_4 = arith.constant 0 : index
    %c0_5 = arith.constant 0 : index
    %4 = vector.load %arg3[%c0_4, %c0_5] : memref<1x128xf32, #tpu.memory_space<vmem>>, vector<1x128xf32>
    %5 = vector.broadcast %4 : vector<1x128xf32> to vector<128x128xf32>
    %6 = arith.mulf %3, %5 : vector<128x128xf32>
    %c0_6 = arith.constant 0 : index
    %c0_7 = arith.constant 0 : index
    %7 = vector.load %arg4[%c0_6, %c0_7] : memref<1x128xf32, #tpu.memory_space<vmem>>, vector<1x128xf32>
    %8 = vector.broadcast %7 : vector<1x128xf32> to vector<128x128xf32>
    %9 = arith.addf %6, %8 : vector<128x128xf32>
    %cst_8 = arith.constant 0.000000e+00 : f32
    %10 = vector.broadcast %cst_8 : f32 to vector<128x128xf32>
    %11 = arith.maximumf %9, %10 : vector<128x128xf32>
    %12 = arith.truncf %11 : vector<128x128xf32> to vector<128x128xbf16>
    %c0_9 = arith.constant 0 : index
    %c0_10 = arith.constant 0 : index
    %13 = vector.load %arg5[%c0_9, %c0_10] : memref<128x128xbf16, #tpu.memory_space<vmem>>, vector<128x128xbf16>
    %cst_11 = arith.constant dense<0.000000e+00> : vector<128x128xf32>
    %14 = tpu.matmul %12, %13, %cst_11 {dimension_numbers = #tpu.dot_dimension_numbers<[1], [0], [0], [1], [0, 0, 1, 1], [], []>} : vector<128x128xbf16>, vector<128x128xbf16>, vector<128x128xf32> -> vector<128x128xf32>
    %c0_12 = arith.constant 0 : index
    %c0_13 = arith.constant 0 : index
    %15 = vector.load %arg6[%c0_12, %c0_13] : memref<1x128xf32, #tpu.memory_space<vmem>>, vector<1x128xf32>
    %16 = vector.broadcast %15 : vector<1x128xf32> to vector<128x128xf32>
    %17 = arith.mulf %14, %16 : vector<128x128xf32>
    %c0_14 = arith.constant 0 : index
    %c0_15 = arith.constant 0 : index
    %18 = vector.load %arg7[%c0_14, %c0_15] : memref<1x128xf32, #tpu.memory_space<vmem>>, vector<1x128xf32>
    %19 = vector.broadcast %18 : vector<1x128xf32> to vector<128x128xf32>
    %20 = arith.addf %17, %19 : vector<128x128xf32>
    %cst_16 = arith.constant 0.000000e+00 : f32
    %21 = vector.broadcast %cst_16 : f32 to vector<128x128xf32>
    %22 = arith.maximumf %20, %21 : vector<128x128xf32>
    %23 = arith.truncf %22 : vector<128x128xf32> to vector<128x128xbf16>
    %c0_17 = arith.constant 0 : index
    %c0_18 = arith.constant 0 : index
    %24 = vector.load %arg8[%c0_17, %c0_18] : memref<128x32xbf16, #tpu.memory_space<vmem>>, vector<128x32xbf16>
    %cst_19 = arith.constant dense<0.000000e+00> : vector<128x32xf32>
    %25 = tpu.matmul %23, %24, %cst_19 {dimension_numbers = #tpu.dot_dimension_numbers<[1], [0], [0], [1], [0, 0, 1, 1], [], []>} : vector<128x128xbf16>, vector<128x32xbf16>, vector<128x32xf32> -> vector<128x32xf32>
    %c0_20 = arith.constant 0 : index
    %c0_21 = arith.constant 0 : index
    %26 = vector.load %arg9[%c0_20, %c0_21] : memref<1x32xf32, #tpu.memory_space<vmem>>, vector<1x32xf32>
    %27 = vector.broadcast %26 : vector<1x32xf32> to vector<128x32xf32>
    %28 = arith.mulf %25, %27 : vector<128x32xf32>
    %c0_22 = arith.constant 0 : index
    %c0_23 = arith.constant 0 : index
    %29 = vector.load %arg10[%c0_22, %c0_23] : memref<1x32xf32, #tpu.memory_space<vmem>>, vector<1x32xf32>
    %30 = vector.broadcast %29 : vector<1x32xf32> to vector<128x32xf32>
    %31 = arith.addf %28, %30 : vector<128x32xf32>
    %cst_24 = arith.constant 0.000000e+00 : f32
    %32 = vector.broadcast %cst_24 : f32 to vector<128x32xf32>
    %33 = arith.maximumf %31, %32 : vector<128x32xf32>
    %34 = vector.extract_strided_slice %33 {offsets = [0, 0], sizes = [16, 32], strides = [1, 1]} : vector<128x32xf32> to vector<16x32xf32>
    %35 = vector.extract_strided_slice %33 {offsets = [16, 0], sizes = [16, 32], strides = [1, 1]} : vector<128x32xf32> to vector<16x32xf32>
    %36 = arith.maximumf %34, %35 : vector<16x32xf32>
    %37 = vector.extract_strided_slice %33 {offsets = [32, 0], sizes = [16, 32], strides = [1, 1]} : vector<128x32xf32> to vector<16x32xf32>
    %38 = arith.maximumf %36, %37 : vector<16x32xf32>
    %39 = vector.extract_strided_slice %33 {offsets = [48, 0], sizes = [16, 32], strides = [1, 1]} : vector<128x32xf32> to vector<16x32xf32>
    %40 = arith.maximumf %38, %39 : vector<16x32xf32>
    %41 = vector.extract_strided_slice %33 {offsets = [64, 0], sizes = [16, 32], strides = [1, 1]} : vector<128x32xf32> to vector<16x32xf32>
    %42 = arith.maximumf %40, %41 : vector<16x32xf32>
    %43 = vector.extract_strided_slice %33 {offsets = [80, 0], sizes = [16, 32], strides = [1, 1]} : vector<128x32xf32> to vector<16x32xf32>
    %44 = arith.maximumf %42, %43 : vector<16x32xf32>
    %45 = vector.extract_strided_slice %33 {offsets = [96, 0], sizes = [16, 32], strides = [1, 1]} : vector<128x32xf32> to vector<16x32xf32>
    %46 = arith.maximumf %44, %45 : vector<16x32xf32>
    %47 = vector.extract_strided_slice %33 {offsets = [112, 0], sizes = [16, 32], strides = [1, 1]} : vector<128x32xf32> to vector<16x32xf32>
    %48 = arith.maximumf %46, %47 : vector<16x32xf32>
    %c0_25 = arith.constant 0 : index
    %c0_26 = arith.constant 0 : index
    %c0_27 = arith.constant 0 : index
    %49 = vector.load %arg11[%c0_25, %c0_26, %c0_27] : memref<1x16x32xf32, #tpu.memory_space<vmem>>, vector<1x16x32xf32>
    %50 = vector.shape_cast %49 : vector<1x16x32xf32> to vector<16x32xf32>
    %51 = vector.shape_cast %48 : vector<16x32xf32> to vector<1x16x32xf32>
    tpu.vector_store %arg11[%c0_25, %c0_26, %c0_27], %51 {strides = array<i32>} : memref<1x16x32xf32, #tpu.memory_space<vmem>>, vector<1x16x32xf32>,
    return
  }
  func.func @transform_0(%arg0: i32) -> (i32, i32, i32) {
    %c0_i32 = arith.constant 0 : i32
    %c0_i32_0 = arith.constant 0 : i32
    %c0_i32_1 = arith.constant 0 : i32
    return %arg0, %c0_i32, %c0_i32_0 : i32, i32, i32
  }
  func.func @transform_1(%arg0: i32) -> (i32, i32) {
    %c0_i32 = arith.constant 0 : i32
    %c0_i32_0 = arith.constant 0 : i32
    %c0_i32_1 = arith.constant 0 : i32
    return %c0_i32, %c0_i32_0 : i32, i32
  }
  func.func @transform_2(%arg0: i32) -> (i32, i32) {
    %c0_i32 = arith.constant 0 : i32
    %c0_i32_0 = arith.constant 0 : i32
    %c0_i32_1 = arith.constant 0 : i32
    return %c0_i32, %c0_i32_0 : i32, i32
  }
  func.func @transform_3(%arg0: i32) -> (i32, i32) {
    %c0_i32 = arith.constant 0 : i32
    %c0_i32_0 = arith.constant 0 : i32
    %c0_i32_1 = arith.constant 0 : i32
    return %c0_i32, %c0_i32_0 : i32, i32
  }
  func.func @transform_4(%arg0: i32) -> (i32, i32) {
    %c0_i32 = arith.constant 0 : i32
    %c0_i32_0 = arith.constant 0 : i32
    %c0_i32_1 = arith.constant 0 : i32
    return %c0_i32, %c0_i32_0 : i32, i32
  }
  func.func @transform_5(%arg0: i32) -> (i32, i32) {
    %c0_i32 = arith.constant 0 : i32
    %c0_i32_0 = arith.constant 0 : i32
    %c0_i32_1 = arith.constant 0 : i32
    return %c0_i32, %c0_i32_0 : i32, i32
  }
  func.func @transform_6(%arg0: i32) -> (i32, i32) {
    %c0_i32 = arith.constant 0 : i32
    %c0_i32_0 = arith.constant 0 : i32
    %c0_i32_1 = arith.constant 0 : i32
    return %c0_i32, %c0_i32_0 : i32, i32
  }
  func.func @transform_7(%arg0: i32) -> (i32, i32) {
    %c0_i32 = arith.constant 0 : i32
    %c0_i32_0 = arith.constant 0 : i32
    %c0_i32_1 = arith.constant 0 : i32
    return %c0_i32, %c0_i32_0 : i32, i32
  }
  func.func @transform_8(%arg0: i32) -> (i32, i32) {
    %c0_i32 = arith.constant 0 : i32
    %c0_i32_0 = arith.constant 0 : i32
    %c0_i32_1 = arith.constant 0 : i32
    return %c0_i32, %c0_i32_0 : i32, i32
  }
  func.func @transform_9(%arg0: i32) -> (i32, i32) {
    %c0_i32 = arith.constant 0 : i32
    %c0_i32_0 = arith.constant 0 : i32
    %c0_i32_1 = arith.constant 0 : i32
    return %c0_i32, %c0_i32_0 : i32, i32
  }
  func.func @transform_10(%arg0: i32) -> (i32, i32, i32) {
    %c0_i32 = arith.constant 0 : i32
    %c0_i32_0 = arith.constant 0 : i32
    %c0_i32_1 = arith.constant 0 : i32
    return %arg0, %c0_i32, %c0_i32_0 : i32, i32, i32
  }
}

</mosaic_0001>

<llo_original>
// kernel: custom-call.8
$region0: #{custom-call.8}
  %s0 = inlined_call_operand.vmem [shape: f32[2,64], index: 0, kind: output, shape index: {}]

// kernel: votenet_decoder_forward.2
$region0: #{votenet_decoder_forward.2}
  #allocation0 [shape = 'u32[]', space=smem, size = 0x4, offset = 0x4, fixed_abs, tag = 'smem constant byte address 0x4 - core index']
  #allocation1 [shape = 'u32[144,128]{1,0:T(1,128)}', space=vmem, size = 0x12000, scoped, tag = 'internal scratch']
  %s0 = inlined_call_operand.vmem [shape: f32[128,35], index: 0, kind: input, shape index: {}]
  %s1 = inlined_call_operand.vmem [shape: bf16[32,32], index: 1, kind: input, shape index: {}]
  %s2 = inlined_call_operand.vmem [shape: f32[1,32], index: 2, kind: input, shape index: {}]
  %s3 = inlined_call_operand.vmem [shape: f32[1,32], index: 3, kind: input, shape index: {}]
  %s4 = inlined_call_operand.vmem [shape: bf16[32,32], index: 4, kind: input, shape index: {}]
  %s5 = inlined_call_operand.vmem [shape: f32[1,32], index: 5, kind: input, shape index: {}]
  %s6 = inlined_call_operand.vmem [shape: f32[1,32], index: 6, kind: input, shape index: {}]
  %s7 = inlined_call_operand.vmem [shape: bf16[32,35], index: 7, kind: input, shape index: {}]
  %s8 = inlined_call_operand.vmem [shape: f32[1,35], index: 8, kind: input, shape index: {}]
  %s9 = inlined_call_operand.vmem [shape: f32[128,35], index: 9, kind: output, shape index: {}]
  %s10 = sld [smem:[#allocation0]]
  $region46: #{votenet_decoder_forward.2} parent=0
    _
  %s12 = ssub.s32 1, %s10
  %s13 = scalar_select 0, %s12, %s10
  // Predicated region
  $region2: #{votenet_decoder_forward.2} parent=0 // pred_check
    _
  $region3: #{votenet_decoder_forward.2} parent=0 // pred_check_branch
    %15 = sbr.rel (0) target = $region5
  $region4: #{votenet_decoder_forward.2} parent=0 // pred_region
    _
  $region5: #{votenet_decoder_forward.2} parent=0 // pred_fallthru
    _
  // Predicated region
  $region6: #{votenet_decoder_forward.2} parent=0 // pred_check
    _
  $region7: #{votenet_decoder_forward.2} parent=0 // pred_check_branch
    %17 = sbr.rel (0) target = $region9
  $region8: #{votenet_decoder_forward.2} parent=0 // pred_region
    _
  $region9: #{votenet_decoder_forward.2} parent=0 // pred_fallthru
    _
  // Predicated region
  $region10: #{votenet_decoder_forward.2} parent=0 // pred_check
    _
  $region11: #{votenet_decoder_forward.2} parent=0 // pred_check_branch
    %19 = sbr.rel (0) target = $region13
  $region12: #{votenet_decoder_forward.2} parent=0 // pred_region
    _
  $region13: #{votenet_decoder_forward.2} parent=0 // pred_fallthru
    _
  // Predicated region
  $region14: #{votenet_decoder_forward.2} parent=0 // pred_check
    _
  $region15: #{votenet_decoder_forward.2} parent=0 // pred_check_branch
    %21 = sbr.rel (0) target = $region17
  $region16: #{votenet_decoder_forward.2} parent=0 // pred_region
    _
  $region17: #{votenet_decoder_forward.2} parent=0 // pred_fallthru
    _
  // Predicated region
  $region18: #{votenet_decoder_forward.2} parent=0 // pred_check
    _
  $region19: #{votenet_decoder_forward.2} parent=0 // pred_check_branch
    %23 = sbr.rel (0) target = $region21
  $region20: #{votenet_decoder_forward.2} parent=0 // pred_region
    _
  $region21: #{votenet_decoder_forward.2} parent=0 // pred_fallthru
    _
  // Predicated region
  $region22: #{votenet_decoder_forward.2} parent=0 // pred_check
    _
  $region23: #{votenet_decoder_forward.2} parent=0 // pred_check_branch
    %25 = sbr.rel (0) target = $region25
  $region24: #{votenet_decoder_forward.2} parent=0 // pred_region
    _
  $region25: #{votenet_decoder_forward.2} parent=0 // pred_fallthru
    _
  // Predicated region
  $region26: #{votenet_decoder_forward.2} parent=0 // pred_check
    _
  $region27: #{votenet_decoder_forward.2} parent=0 // pred_check_branch
    %27 = sbr.rel (0) target = $region29
  $region28: #{votenet_decoder_forward.2} parent=0 // pred_region
    _
  $region29: #{votenet_decoder_forward.2} parent=0 // pred_fallthru
    _
  // Predicated region
  $region30: #{votenet_decoder_forward.2} parent=0 // pred_check
    _
  $region31: #{votenet_decoder_forward.2} parent=0 // pred_check_branch
    %29 = sbr.rel (0) target = $region33
  $region32: #{votenet_decoder_forward.2} parent=0 // pred_region
    _
  $region33: #{votenet_decoder_forward.2} parent=0 // pred_fallthru
    _
  // Predicated region
  $region34: #{votenet_decoder_forward.2} parent=0 // pred_check
    _
  $region35: #{votenet_decoder_forward.2} parent=0 // pred_check_branch
    %31 = sbr.rel (0) target = $region37
  $region36: #{votenet_decoder_forward.2} parent=0 // pred_region
    _
  $region37: #{votenet_decoder_forward.2} parent=0 // pred_fallthru
    _
  %v33 = vld [vmem:[%s0] sm:$0xff]
  %v34 = vld [vmem:[%s0 + $0x8] sm:$0xff]
  %v35 = vld [vmem:[%s0 + $0x10] sm:$0xff]
  %v36 = vld [vmem:[%s0 + $0x18] sm:$0xff]
  %v37 = vld [vmem:[%s0 + $0x20] sm:$0xff]
  %v38 = vld [vmem:[%s0 + $0x28] sm:$0xff]
  %v39 = vld [vmem:[%s0 + $0x30] sm:$0xff]
  %v40 = vld [vmem:[%s0 + $0x38] sm:$0xff]
  %v41 = vld [vmem:[%s0 + $0x40] sm:$0xff]
  %v42 = vld [vmem:[%s0 + $0x48] sm:$0xff]
  %v43 = vld [vmem:[%s0 + $0x50] sm:$0xff]
  %v44 = vld [vmem:[%s0 + $0x58] sm:$0xff]
  %v45 = vld [vmem:[%s0 + $0x60] sm:$0xff]
  %v46 = vld [vmem:[%s0 + $0x68] sm:$0xff]
  %v47 = vld [vmem:[%s0 + $0x70] sm:$0xff]
  %v48 = vld [vmem:[%s0 + $0x78] sm:$0xff]
  %v49 = vpack.c.bf16 %v34, %v33
  %v50 = vpack.c.bf16 %v36, %v35
  %v51 = vpack.c.bf16 %v38, %v37
  %v52 = vpack.c.bf16 %v40, %v39
  %v53 = vpack.c.bf16 %v42, %v41
  %v54 = vpack.c.bf16 %v44, %v43
  %v55 = vpack.c.bf16 %v46, %v45
  %v56 = vpack.c.bf16 %v48, %v47
  %v57 = vld [vmem:[%s1] sm:$0xf]
  %v58 = vld [vmem:[%s1 + $0x4] sm:$0xf]
  %v59 = vld [vmem:[%s1 + $0x8] sm:$0xf]
  %v60 = vld [vmem:[%s1 + $0xc] sm:$0xf]
  %69 = vrot.lane.b32.xlu0 %v49, 125
  %v70 = vpop.permute.xlu0 %69
  %71 = vrot.lane.b32.xlu0 %v50, 125
  %v72 = vpop.permute.xlu0 %71
  %73 = vrot.lane.b32.xlu0 %v51, 125
  %v74 = vpop.permute.xlu0 %73
  %75 = vrot.lane.b32.xlu0 %v52, 125
  %v76 = vpop.permute.xlu0 %75
  %77 = vrot.lane.b32.xlu0 %v53, 125
  %v78 = vpop.permute.xlu0 %77
  %79 = vrot.lane.b32.xlu0 %v54, 125
  %v80 = vpop.permute.xlu0 %79
  %81 = vrot.lane.b32.xlu0 %v55, 125
  %v82 = vpop.permute.xlu0 %81
  %83 = vrot.lane.b32.xlu0 %v56, 125
  %v84 = vpop.permute.xlu0 %83
  %v89 = vunpack.c.l.b16 %v57
  %v90 = vunpack.c.l.b16 %v58
  %v91 = vunpack.c.l.b16 %v59
  %v92 = vunpack.c.l.b16 %v60
  %v93 = vpack.c.b16 %v90, %v89
  %v94 = vpack.c.b16 %v92, %v91
  %vm97 = vcmask 261120
  %v99 = vsel %vm97, %v70, 0
  %v102 = vsel %vm97, %v72, 0
  %v105 = vsel %vm97, %v74, 0
  %v108 = vsel %vm97, %v76, 0
  %v111 = vsel %vm97, %v78, 0
  %v114 = vsel %vm97, %v80, 0
  %v117 = vsel %vm97, %v82, 0
  %v120 = vsel %vm97, %v84, 0
  %122 = vmatprep.subr.bf16.mxu0 0
  %123 = vmatpush1.bf16.msra.mxu0 0
  %124 = vmatprep.subr.bf16.mxu0 0
  %125 = vmatpush1.bf16.msra.mxu0 0
  %126 = vmatprep.subr.bf16.mxu0 0
  %127 = vmatpush1.bf16.msra.mxu0 0
  %128 = vmatprep.subr.bf16.mxu0 0
  %129 = vmatpush1.bf16.msra.mxu0 0
  %130 = vmatprep.subr.bf16.mxu0 0
  %131 = vmatpush1.bf16.msra.mxu0 0
  %132 = vmatprep.subr.bf16.mxu0 0
  %133 = vmatpush1.bf16.msra.mxu0 0
  %134 = vmatprep.subr.bf16.mxu0 0
  %135 = vmatpush1.bf16.msra.mxu0 %v94
  %136 = vmatprep.subr.bf16.mxu0 0
  %137 = vmatpush1.bf16.msra.mxu0 %v93
  %138 = vmatprep.subr.bf16.mxu0 0
  %139 = vmatpush2.bf16.msra.mxu0 0
  %140 = vmatprep.subr.bf16.mxu0 0
  %141 = vmatpush2.bf16.msra.mxu0 0
  %142 = vmatprep.subr.bf16.mxu0 0
  %143 = vmatpush2.bf16.msra.mxu0 0
  %144 = vmatprep.subr.bf16.mxu0 0
  %145 = vmatpush2.bf16.msra.mxu0 0
  %146 = vmatprep.subr.bf16.mxu0 0
  %147 = vmatpush2.bf16.msra.mxu0 0
  %148 = vmatprep.subr.bf16.mxu0 0
  %149 = vmatpush2.bf16.msra.mxu0 0
  %150 = vmatprep.subr.bf16.mxu0 0
  %151 = vmatpush2.bf16.msra.mxu0 0
  %152 = vmatprep.subr.bf16.mxu0 0
  %153 = vmatpush2.bf16.msra.mxu0 0
  %154 = vmatprep.mubr.bf16.mxu0 0
  %155 = vmatmul.mubr.bf16.gmra.mxu0 %v99
  %v156 = vpop.f32.mrf.mxu0
  %v157 = vadd.f32 0.0, %v156
  %v158 = vpop.f32.mrf.mxu0
  %v159 = vpop.f32.mrf.mxu0
  %v160 = vadd.f32 0.0, %v159
  %v161 = vpop.f32.mrf.mxu0
  %162 = vmatprep.mubr.bf16.mxu0 0
  %163 = vmatmul.mubr.bf16.gmra.mxu0 %v102
  %v164 = vpop.f32.mrf.mxu0
  %v165 = vadd.f32 0.0, %v164
  %v166 = vpop.f32.mrf.mxu0
  %v167 = vpop.f32.mrf.mxu0
  %v168 = vadd.f32 0.0, %v167
  %v169 = vpop.f32.mrf.mxu0
  %170 = vmatprep.mubr.bf16.mxu0 0
  %171 = vmatmul.mubr.bf16.gmra.mxu0 %v105
  %v172 = vpop.f32.mrf.mxu0
  %v173 = vadd.f32 0.0, %v172
  %v174 = vpop.f32.mrf.mxu0
  %v175 = vpop.f32.mrf.mxu0
  %v176 = vadd.f32 0.0, %v175
  %v177 = vpop.f32.mrf.mxu0
  %178 = vmatprep.mubr.bf16.mxu0 0
  %179 = vmatmul.mubr.bf16.gmra.mxu0 %v108
  %v180 = vpop.f32.mrf.mxu0
  %v181 = vadd.f32 0.0, %v180
  %v182 = vpop.f32.mrf.mxu0
  %v183 = vpop.f32.mrf.mxu0
  %v184 = vadd.f32 0.0, %v183
  %v185 = vpop.f32.mrf.mxu0
  %186 = vmatprep.mubr.bf16.mxu0 0
  %187 = vmatmul.mubr.bf16.gmra.mxu0 %v111
  %v188 = vpop.f32.mrf.mxu0
  %v189 = vadd.f32 0.0, %v188
  %v190 = vpop.f32.mrf.mxu0
  %v191 = vpop.f32.mrf.mxu0
  %v192 = vadd.f32 0.0, %v191
  %v193 = vpop.f32.mrf.mxu0
  %194 = vmatprep.mubr.bf16.mxu0 0
  %195 = vmatmul.mubr.bf16.gmra.mxu0 %v114
  %v196 = vpop.f32.mrf.mxu0
  %v197 = vadd.f32 0.0, %v196
  %v198 = vpop.f32.mrf.mxu0
  %v199 = vpop.f32.mrf.mxu0
  %v200 = vadd.f32 0.0, %v199
  %v201 = vpop.f32.mrf.mxu0
  %202 = vmatprep.mubr.bf16.mxu0 0
  %203 = vmatmul.mubr.bf16.gmra.mxu0 %v117
  %v204 = vpop.f32.mrf.mxu0
  %v205 = vadd.f32 0.0, %v204
  %v206 = vpop.f32.mrf.mxu0
  %v207 = vpop.f32.mrf.mxu0
  %v208 = vadd.f32 0.0, %v207
  %v209 = vpop.f32.mrf.mxu0
  %210 = vmatprep.mubr.bf16.mxu0 0
  %211 = vmatmul.mubr.bf16.gmra.mxu0 %v120
  %v212 = vpop.f32.mrf.mxu0
  %v213 = vadd.f32 0.0, %v212
  %v214 = vpop.f32.mrf.mxu0
  %v215 = vpop.f32.mrf.mxu0
  %v216 = vadd.f32 0.0, %v215
  %v217 = vpop.f32.mrf.mxu0
  %218 = vdwg.mxu0
  %v219 = vld [vmem:[%s2] sm:$0x1]
  %v221 = vlaneseq
  %v222 = vshrl.u32 %v221, 7
  %v223 = vsub.s32 0, %v222
  %v224 = vrot.slane %v219, %v223
  %v226 = vmul.f32 %v157, %v224
  %v227 = vmul.f32 %v160, %v224
  %v228 = vmul.f32 %v165, %v224
  %v229 = vmul.f32 %v168, %v224
  %v230 = vmul.f32 %v173, %v224
  %v231 = vmul.f32 %v176, %v224
  %v232 = vmul.f32 %v181, %v224
  %v233 = vmul.f32 %v184, %v224
  %v234 = vmul.f32 %v189, %v224
  %v235 = vmul.f32 %v192, %v224
  %v236 = vmul.f32 %v197, %v224
  %v237 = vmul.f32 %v200, %v224
  %v238 = vmul.f32 %v205, %v224
  %v239 = vmul.f32 %v208, %v224
  %v240 = vmul.f32 %v213, %v224
  %v241 = vmul.f32 %v216, %v224
  %v242 = vld [vmem:[%s3] sm:$0x1]
  %v244 = vlaneseq
  %v245 = vshrl.u32 %v244, 7
  %v246 = vsub.s32 0, %v245
  %v247 = vrot.slane %v242, %v246
  %v249 = vadd.f32 %v226, %v247
  %v250 = vadd.f32 %v227, %v247
  %v251 = vadd.f32 %v228, %v247
  %v252 = vadd.f32 %v229, %v247
  %v253 = vadd.f32 %v230, %v247
  %v254 = vadd.f32 %v231, %v247
  %v255 = vadd.f32 %v232, %v247
  %v256 = vadd.f32 %v233, %v247
  %v257 = vadd.f32 %v234, %v247
  %v258 = vadd.f32 %v235, %v247
  %v259 = vadd.f32 %v236, %v247
  %v260 = vadd.f32 %v237, %v247
  %v261 = vadd.f32 %v238, %v247
  %v262 = vadd.f32 %v239, %v247
  %v263 = vadd.f32 %v240, %v247
  %v264 = vadd.f32 %v241, %v247
  %v265 = vmax.f32 %v249, 0.0
  %v266 = vmax.f32 %v250, 0.0
  %v267 = vmax.f32 %v251, 0.0
  %v268 = vmax.f32 %v252, 0.0
  %v269 = vmax.f32 %v253, 0.0
  %v270 = vmax.f32 %v254, 0.0
  %v271 = vmax.f32 %v255, 0.0
  %v272 = vmax.f32 %v256, 0.0
  %v273 = vmax.f32 %v257, 0.0
  %v274 = vmax.f32 %v258, 0.0
  %v275 = vmax.f32 %v259, 0.0
  %v276 = vmax.f32 %v260, 0.0
  %v277 = vmax.f32 %v261, 0.0
  %v278 = vmax.f32 %v262, 0.0
  %v279 = vmax.f32 %v263, 0.0
  %v280 = vmax.f32 %v264, 0.0
  %v281 = vpack.c.bf16 %v266, %v265
  %v282 = vpack.c.bf16 %v268, %v267
  %v283 = vpack.c.bf16 %v270, %v269
  %v284 = vpack.c.bf16 %v272, %v271
  %v285 = vpack.c.bf16 %v274, %v273
  %v286 = vpack.c.bf16 %v276, %v275
  %v287 = vpack.c.bf16 %v278, %v277
  %v288 = vpack.c.bf16 %v280, %v279
  %v289 = vld [vmem:[%s4] sm:$0xf]
  %v290 = vld [vmem:[%s4 + $0x4] sm:$0xf]
  %v291 = vld [vmem:[%s4 + $0x8] sm:$0xf]
  %v292 = vld [vmem:[%s4 + $0xc] sm:$0xf]
  %v297 = vunpack.c.l.b16 %v289
  %v298 = vunpack.c.l.b16 %v290
  %v299 = vunpack.c.l.b16 %v291
  %v300 = vunpack.c.l.b16 %v292
  %v301 = vpack.c.b16 %v298, %v297
  %v302 = vpack.c.b16 %v300, %v299
  %v306 = vsel %vm97, %v281, 0
  %v309 = vsel %vm97, %v282, 0
  %v312 = vsel %vm97, %v283, 0
  %v315 = vsel %vm97, %v284, 0
  %v318 = vsel %vm97, %v285, 0
  %v321 = vsel %vm97, %v286, 0
  %v324 = vsel %vm97, %v287, 0
  %v327 = vsel %vm97, %v288, 0
  %329 = vmatprep.subr.bf16.mxu0 0
  %330 = vmatpush1.bf16.msra.mxu0 0
  %331 = vmatprep.subr.bf16.mxu0 0
  %332 = vmatpush1.bf16.msra.mxu0 0
  %333 = vmatprep.subr.bf16.mxu0 0
  %334 = vmatpush1.bf16.msra.mxu0 0
  %335 = vmatprep.subr.bf16.mxu0 0
  %336 = vmatpush1.bf16.msra.mxu0 0
  %337 = vmatprep.subr.bf16.mxu0 0
  %338 = vmatpush1.bf16.msra.mxu0 0
  %339 = vmatprep.subr.bf16.mxu0 0
  %340 = vmatpush1.bf16.msra.mxu0 0
  %341 = vmatprep.subr.bf16.mxu0 0
  %342 = vmatpush1.bf16.msra.mxu0 %v302
  %343 = vmatprep.subr.bf16.mxu0 0
  %344 = vmatpush1.bf16.msra.mxu0 %v301
  %345 = vmatprep.subr.bf16.mxu0 0
  %346 = vmatpush2.bf16.msra.mxu0 0
  %347 = vmatprep.subr.bf16.mxu0 0
  %348 = vmatpush2.bf16.msra.mxu0 0
  %349 = vmatprep.subr.bf16.mxu0 0
  %350 = vmatpush2.bf16.msra.mxu0 0
  %351 = vmatprep.subr.bf16.mxu0 0
  %352 = vmatpush2.bf16.msra.mxu0 0
  %353 = vmatprep.subr.bf16.mxu0 0
  %354 = vmatpush2.bf16.msra.mxu0 0
  %355 = vmatprep.subr.bf16.mxu0 0
  %356 = vmatpush2.bf16.msra.mxu0 0
  %357 = vmatprep.subr.bf16.mxu0 0
  %358 = vmatpush2.bf16.msra.mxu0 0
  %359 = vmatprep.subr.bf16.mxu0 0
  %360 = vmatpush2.bf16.msra.mxu0 0
  %361 = vmatprep.mubr.bf16.mxu0 0
  %362 = vmatmul.mubr.bf16.gmra.mxu0 %v306
  %v363 = vpop.f32.mrf.mxu0
  %v364 = vadd.f32 0.0, %v363
  %v365 = vpop.f32.mrf.mxu0
  %v366 = vpop.f32.mrf.mxu0
  %v367 = vadd.f32 0.0, %v366
  %v368 = vpop.f32.mrf.mxu0
  %369 = vmatprep.mubr.bf16.mxu0 0
  %370 = vmatmul.mubr.bf16.gmra.mxu0 %v309
  %v371 = vpop.f32.mrf.mxu0
  %v372 = vadd.f32 0.0, %v371
  %v373 = vpop.f32.mrf.mxu0
  %v374 = vpop.f32.mrf.mxu0
  %v375 = vadd.f32 0.0, %v374
  %v376 = vpop.f32.mrf.mxu0
  %377 = vmatprep.mubr.bf16.mxu0 0
  %378 = vmatmul.mubr.bf16.gmra.mxu0 %v312
  %v379 = vpop.f32.mrf.mxu0
  %v380 = vadd.f32 0.0, %v379
  %v381 = vpop.f32.mrf.mxu0
  %v382 = vpop.f32.mrf.mxu0
  %v383 = vadd.f32 0.0, %v382
  %v384 = vpop.f32.mrf.mxu0
  %385 = vmatprep.mubr.bf16.mxu0 0
  %386 = vmatmul.mubr.bf16.gmra.mxu0 %v315
  %v387 = vpop.f32.mrf.mxu0
  %v388 = vadd.f32 0.0, %v387
  %v389 = vpop.f32.mrf.mxu0
  %v390 = vpop.f32.mrf.mxu0
  %v391 = vadd.f32 0.0, %v390
  %v392 = vpop.f32.mrf.mxu0
  %393 = vmatprep.mubr.bf16.mxu0 0
  %394 = vmatmul.mubr.bf16.gmra.mxu0 %v318
  %v395 = vpop.f32.mrf.mxu0
  %v396 = vadd.f32 0.0, %v395
  %v397 = vpop.f32.mrf.mxu0
  %v398 = vpop.f32.mrf.mxu0
  %v399 = vadd.f32 0.0, %v398
  %v400 = vpop.f32.mrf.mxu0
  %401 = vmatprep.mubr.bf16.mxu0 0
  %402 = vmatmul.mubr.bf16.gmra.mxu0 %v321
  %v403 = vpop.f32.mrf.mxu0
  %v404 = vadd.f32 0.0, %v403
  %v405 = vpop.f32.mrf.mxu0
  %v406 = vpop.f32.mrf.mxu0
  %v407 = vadd.f32 0.0, %v406
  %v408 = vpop.f32.mrf.mxu0
  %409 = vmatprep.mubr.bf16.mxu0 0
  %410 = vmatmul.mubr.bf16.gmra.mxu0 %v324
  %v411 = vpop.f32.mrf.mxu0
  %v412 = vadd.f32 0.0, %v411
  %v413 = vpop.f32.mrf.mxu0
  %v414 = vpop.f32.mrf.mxu0
  %v415 = vadd.f32 0.0, %v414
  %v416 = vpop.f32.mrf.mxu0
  %417 = vmatprep.mubr.bf16.mxu0 0
  %418 = vmatmul.mubr.bf16.gmra.mxu0 %v327
  %v419 = vpop.f32.mrf.mxu0
  %v420 = vadd.f32 0.0, %v419
  %v421 = vpop.f32.mrf.mxu0
  %v422 = vpop.f32.mrf.mxu0
  %v423 = vadd.f32 0.0, %v422
  %v424 = vpop.f32.mrf.mxu0
  %425 = vdwg.mxu0
  %v426 = vld [vmem:[%s5] sm:$0x1]
  %v428 = vlaneseq
  %v429 = vshrl.u32 %v428, 7
  %v430 = vsub.s32 0, %v429
  %v431 = vrot.slane %v426, %v430
  %v433 = vmul.f32 %v364, %v431
  %v434 = vmul.f32 %v367, %v431
  %v435 = vmul.f32 %v372, %v431
  %v436 = vmul.f32 %v375, %v431
  %v437 = vmul.f32 %v380, %v431
  %v438 = vmul.f32 %v383, %v431
  %v439 = vmul.f32 %v388, %v431
  %v440 = vmul.f32 %v391, %v431
  %v441 = vmul.f32 %v396, %v431
  %v442 = vmul.f32 %v399, %v431
  %v443 = vmul.f32 %v404, %v431
  %v444 = vmul.f32 %v407, %v431
  %v445 = vmul.f32 %v412, %v431
  %v446 = vmul.f32 %v415, %v431
  %v447 = vmul.f32 %v420, %v431
  %v448 = vmul.f32 %v423, %v431
  %v449 = vld [vmem:[%s6] sm:$0x1]
  %v451 = vlaneseq
  %v452 = vshrl.u32 %v451, 7
  %v453 = vsub.s32 0, %v452
  %v454 = vrot.slane %v449, %v453
  %v456 = vadd.f32 %v433, %v454
  %v457 = vadd.f32 %v434, %v454
  %v458 = vadd.f32 %v435, %v454
  %v459 = vadd.f32 %v436, %v454
  %v460 = vadd.f32 %v437, %v454
  %v461 = vadd.f32 %v438, %v454
  %v462 = vadd.f32 %v439, %v454
  %v463 = vadd.f32 %v440, %v454
  %v464 = vadd.f32 %v441, %v454
  %v465 = vadd.f32 %v442, %v454
  %v466 = vadd.f32 %v443, %v454
  %v467 = vadd.f32 %v444, %v454
  %v468 = vadd.f32 %v445, %v454
  %v469 = vadd.f32 %v446, %v454
  %v470 = vadd.f32 %v447, %v454
  %v471 = vadd.f32 %v448, %v454
  %v472 = vmax.f32 %v456, 0.0
  %v473 = vmax.f32 %v457, 0.0
  %v474 = vmax.f32 %v458, 0.0
  %v475 = vmax.f32 %v459, 0.0
  %v476 = vmax.f32 %v460, 0.0
  %v477 = vmax.f32 %v461, 0.0
  %v478 = vmax.f32 %v462, 0.0
  %v479 = vmax.f32 %v463, 0.0
  %v480 = vmax.f32 %v464, 0.0
  %v481 = vmax.f32 %v465, 0.0
  %v482 = vmax.f32 %v466, 0.0
  %v483 = vmax.f32 %v467, 0.0
  %v484 = vmax.f32 %v468, 0.0
  %v485 = vmax.f32 %v469, 0.0
  %v486 = vmax.f32 %v470, 0.0
  %v487 = vmax.f32 %v471, 0.0
  %v488 = vpack.c.bf16 %v473, %v472
  %v489 = vpack.c.bf16 %v475, %v474
  %v490 = vpack.c.bf16 %v477, %v476
  %v491 = vpack.c.bf16 %v479, %v478
  %v492 = vpack.c.bf16 %v481, %v480
  %v493 = vpack.c.bf16 %v483, %v482
  %v494 = vpack.c.bf16 %v485, %v484
  %v495 = vpack.c.bf16 %v487, %v486
  %v496 = vld [vmem:[%s7] sm:$0xf]
  %v497 = vld [vmem:[%s7 + $0x4] sm:$0xf]
  %v498 = vld [vmem:[%s7 + $0x8] sm:$0xf]
  %v499 = vld [vmem:[%s7 + $0xc] sm:$0xf]
  %v500 = vld [vmem:[%s8] sm:$0x1]
  %v502 = vlaneseq
  %v503 = vshrl.u32 %v502, 7
  %v504 = vsub.s32 0, %v503
  %v505 = vrot.slane %v500, %v504
  %v511 = vunpack.c.l.b16 %v496
  %v512 = vunpack.c.l.b16 %v497
  %v513 = vunpack.c.l.b16 %v498
  %v514 = vunpack.c.l.b16 %v499
  %v515 = vpack.c.b16 %v512, %v511
  %v516 = vpack.c.b16 %v514, %v513
  %v520 = vsel %vm97, %v488, 0
  %v523 = vsel %vm97, %v489, 0
  %v526 = vsel %vm97, %v490, 0
  %v529 = vsel %vm97, %v491, 0
  %v532 = vsel %vm97, %v492, 0
  %v535 = vsel %vm97, %v493, 0
  %v538 = vsel %vm97, %v494, 0
  %v541 = vsel %vm97, %v495, 0
  %543 = vmatprep.subr.bf16.mxu0 0
  %544 = vmatpush1.bf16.msra.mxu0 0
  %545 = vmatprep.subr.bf16.mxu0 0
  %546 = vmatpush1.bf16.msra.mxu0 0
  %547 = vmatprep.subr.bf16.mxu0 0
  %548 = vmatpush1.bf16.msra.mxu0 0
  %549 = vmatprep.subr.bf16.mxu0 0
  %550 = vmatpush1.bf16.msra.mxu0 0
  %551 = vmatprep.subr.bf16.mxu0 0
  %552 = vmatpush1.bf16.msra.mxu0 0
  %553 = vmatprep.subr.bf16.mxu0 0
  %554 = vmatpush1.bf16.msra.mxu0 0
  %555 = vmatprep.subr.bf16.mxu0 0
  %556 = vmatpush1.bf16.msra.mxu0 %v516
  %557 = vmatprep.subr.bf16.mxu0 0
  %558 = vmatpush1.bf16.msra.mxu0 %v515
  %559 = vmatprep.subr.bf16.mxu0 0
  %560 = vmatpush2.bf16.msra.mxu0 0
  %561 = vmatprep.subr.bf16.mxu0 0
  %562 = vmatpush2.bf16.msra.mxu0 0
  %563 = vmatprep.subr.bf16.mxu0 0
  %564 = vmatpush2.bf16.msra.mxu0 0
  %565 = vmatprep.subr.bf16.mxu0 0
  %566 = vmatpush2.bf16.msra.mxu0 0
  %567 = vmatprep.subr.bf16.mxu0 0
  %568 = vmatpush2.bf16.msra.mxu0 0
  %569 = vmatprep.subr.bf16.mxu0 0
  %570 = vmatpush2.bf16.msra.mxu0 0
  %571 = vmatprep.subr.bf16.mxu0 0
  %572 = vmatpush2.bf16.msra.mxu0 0
  %573 = vmatprep.subr.bf16.mxu0 0
  %574 = vmatpush2.bf16.msra.mxu0 0
  %575 = vmatprep.mubr.bf16.mxu0 0
  %576 = vmatmul.mubr.bf16.gmra.mxu0 %v520
  %v577 = vpop.f32.mrf.mxu0
  %v578 = vadd.f32 %v505, %v577
  %v579 = vpop.f32.mrf.mxu0
  %v580 = vpop.f32.mrf.mxu0
  %v581 = vadd.f32 %v505, %v580
  %v582 = vpop.f32.mrf.mxu0
  %583 = vmatprep.mubr.bf16.mxu0 0
  %584 = vmatmul.mubr.bf16.gmra.mxu0 %v523
  %v585 = vpop.f32.mrf.mxu0
  %v586 = vadd.f32 %v505, %v585
  %v587 = vpop.f32.mrf.mxu0
  %v588 = vpop.f32.mrf.mxu0
  %v589 = vadd.f32 %v505, %v588
  %v590 = vpop.f32.mrf.mxu0
  %591 = vmatprep.mubr.bf16.mxu0 0
  %592 = vmatmul.mubr.bf16.gmra.mxu0 %v526
  %v593 = vpop.f32.mrf.mxu0
  %v594 = vadd.f32 %v505, %v593
  %v595 = vpop.f32.mrf.mxu0
  %v596 = vpop.f32.mrf.mxu0
  %v597 = vadd.f32 %v505, %v596
  %v598 = vpop.f32.mrf.mxu0
  %599 = vmatprep.mubr.bf16.mxu0 0
  %600 = vmatmul.mubr.bf16.gmra.mxu0 %v529
  %v601 = vpop.f32.mrf.mxu0
  %v602 = vadd.f32 %v505, %v601
  %v603 = vpop.f32.mrf.mxu0
  %v604 = vpop.f32.mrf.mxu0
  %v605 = vadd.f32 %v505, %v604
  %v606 = vpop.f32.mrf.mxu0
  %607 = vmatprep.mubr.bf16.mxu0 0
  %608 = vmatmul.mubr.bf16.gmra.mxu0 %v532
  %v609 = vpop.f32.mrf.mxu0
  %v610 = vadd.f32 %v505, %v609
  %v611 = vpop.f32.mrf.mxu0
  %v612 = vpop.f32.mrf.mxu0
  %v613 = vadd.f32 %v505, %v612
  %v614 = vpop.f32.mrf.mxu0
  %615 = vmatprep.mubr.bf16.mxu0 0
  %616 = vmatmul.mubr.bf16.gmra.mxu0 %v535
  %v617 = vpop.f32.mrf.mxu0
  %v618 = vadd.f32 %v505, %v617
  %v619 = vpop.f32.mrf.mxu0
  %v620 = vpop.f32.mrf.mxu0
  %v621 = vadd.f32 %v505, %v620
  %v622 = vpop.f32.mrf.mxu0
  %623 = vmatprep.mubr.bf16.mxu0 0
  %624 = vmatmul.mubr.bf16.gmra.mxu0 %v538
  %v625 = vpop.f32.mrf.mxu0
  %v626 = vadd.f32 %v505, %v625
  %v627 = vpop.f32.mrf.mxu0
  %v628 = vpop.f32.mrf.mxu0
  %v629 = vadd.f32 %v505, %v628
  %v630 = vpop.f32.mrf.mxu0
  %631 = vmatprep.mubr.bf16.mxu0 0
  %632 = vmatmul.mubr.bf16.gmra.mxu0 %v541
  %v633 = vpop.f32.mrf.mxu0
  %v634 = vadd.f32 %v505, %v633
  %v635 = vpop.f32.mrf.mxu0
  %v636 = vpop.f32.mrf.mxu0
  %v637 = vadd.f32 %v505, %v636
  %v638 = vpop.f32.mrf.mxu0
  %639 = vdwg.mxu0
  %v640 = vadd.f32 %v33, %v578
  %v641 = vadd.f32 %v34, %v581
  %v642 = vadd.f32 %v35, %v586
  %v643 = vadd.f32 %v36, %v589
  %v644 = vadd.f32 %v37, %v594
  %v645 = vadd.f32 %v38, %v597
  %v646 = vadd.f32 %v39, %v602
  %v647 = vadd.f32 %v40, %v605
  %v648 = vadd.f32 %v41, %v610
  %v649 = vadd.f32 %v42, %v613
  %v650 = vadd.f32 %v43, %v618
  %v651 = vadd.f32 %v44, %v621
  %v652 = vadd.f32 %v45, %v626
  %v653 = vadd.f32 %v46, %v629
  %v654 = vadd.f32 %v47, %v634
  %v655 = vadd.f32 %v48, %v637
  %v656 = vlaneseq
  %v657 = vand.u32 %v656, 127
  %vm658 = vcmp.ge.s32.totalorder %v657, 3
  %v659 = vmul.f32 %v640, %v640
  %v660 = vmul.f32 %v641, %v641
  %v661 = vmul.f32 %v642, %v642
  %v662 = vmul.f32 %v643, %v643
  %v663 = vmul.f32 %v644, %v644
  %v664 = vmul.f32 %v645, %v645
  %v665 = vmul.f32 %v646, %v646
  %v666 = vmul.f32 %v647, %v647
  %v667 = vmul.f32 %v648, %v648
  %v668 = vmul.f32 %v649, %v649
  %v669 = vmul.f32 %v650, %v650
  %v670 = vmul.f32 %v651, %v651
  %v671 = vmul.f32 %v652, %v652
  %v672 = vmul.f32 %v653, %v653
  %v673 = vmul.f32 %v654, %v654
  %v674 = vmul.f32 %v655, %v655
  %v675 = vsel %vm658, %v659, 0.0
  %v676 = vsel %vm658, %v660, 0.0
  %v677 = vsel %vm658, %v661, 0.0
  %v678 = vsel %vm658, %v662, 0.0
  %v679 = vsel %vm658, %v663, 0.0
  %v680 = vsel %vm658, %v664, 0.0
  %v681 = vsel %vm658, %v665, 0.0
  %v682 = vsel %vm658, %v666, 0.0
  %v683 = vsel %vm658, %v667, 0.0
  %v684 = vsel %vm658, %v668, 0.0
  %v685 = vsel %vm658, %v669, 0.0
  %v686 = vsel %vm658, %v670, 0.0
  %v687 = vsel %vm658, %v671, 0.0
  %v688 = vsel %vm658, %v672, 0.0
  %v689 = vsel %vm658, %v673, 0.0
  %v690 = vsel %vm658, %v674, 0.0
  %vm691 = vcmask 285696
  %v692 = vsel %vm691, %v675, 0.0
  %693 = vadd.xlane.f32.xlu0 %v692
  %v694 = vpop.xlane.xlu0 %693
  %v695 = vsel %vm691, %v676, 0.0
  %696 = vadd.xlane.f32.xlu0 %v695
  %v697 = vpop.xlane.xlu0 %696
  %v698 = vsel %vm691, %v677, 0.0
  %699 = vadd.xlane.f32.xlu0 %v698
  %v700 = vpop.xlane.xlu0 %699
  %v701 = vsel %vm691, %v678, 0.0
  %702 = vadd.xlane.f32.xlu0 %v701
  %v703 = vpop.xlane.xlu0 %702
  %v704 = vsel %vm691, %v679, 0.0
  %705 = vadd.xlane.f32.xlu0 %v704
  %v706 = vpop.xlane.xlu0 %705
  %v707 = vsel %vm691, %v680, 0.0
  %708 = vadd.xlane.f32.xlu0 %v707
  %v709 = vpop.xlane.xlu0 %708
  %v710 = vsel %vm691, %v681, 0.0
  %711 = vadd.xlane.f32.xlu0 %v710
  %v712 = vpop.xlane.xlu0 %711
  %v713 = vsel %vm691, %v682, 0.0
  %714 = vadd.xlane.f32.xlu0 %v713
  %v715 = vpop.xlane.xlu0 %714
  %v716 = vsel %vm691, %v683, 0.0
  %717 = vadd.xlane.f32.xlu0 %v716
  %v718 = vpop.xlane.xlu0 %717
  %v719 = vsel %vm691, %v684, 0.0
  %720 = vadd.xlane.f32.xlu0 %v719
  %v721 = vpop.xlane.xlu0 %720
  %v722 = vsel %vm691, %v685, 0.0
  %723 = vadd.xlane.f32.xlu0 %v722
  %v724 = vpop.xlane.xlu0 %723
  %v725 = vsel %vm691, %v686, 0.0
  %726 = vadd.xlane.f32.xlu0 %v725
  %v727 = vpop.xlane.xlu0 %726
  %v728 = vsel %vm691, %v687, 0.0
  %729 = vadd.xlane.f32.xlu0 %v728
  %v730 = vpop.xlane.xlu0 %729
  %v731 = vsel %vm691, %v688, 0.0
  %732 = vadd.xlane.f32.xlu0 %v731
  %v733 = vpop.xlane.xlu0 %732
  %v734 = vsel %vm691, %v689, 0.0
  %735 = vadd.xlane.f32.xlu0 %v734
  %v736 = vpop.xlane.xlu0 %735
  %v737 = vsel %vm691, %v690, 0.0
  %738 = vadd.xlane.f32.xlu0 %v737
  %v739 = vpop.xlane.xlu0 %738
  %v740 = vrsqrt.pop %v694
  %v741 = vrsqrt.pop %v697
  %v742 = vrsqrt.pop %v700
  %v743 = vrsqrt.pop %v703
  %v744 = vrsqrt.pop %v706
  %v745 = vrsqrt.pop %v709
  %v746 = vrsqrt.pop %v712
  %v747 = vrsqrt.pop %v715
  %v748 = vrsqrt.pop %v718
  %v749 = vrsqrt.pop %v721
  %v750 = vrsqrt.pop %v724
  %v751 = vrsqrt.pop %v727
  %v752 = vrsqrt.pop %v730
  %v753 = vrsqrt.pop %v733
  %v754 = vrsqrt.pop %v736
  %v755 = vrsqrt.pop %v739
  %v756 = vmul.f32 %v640, %v740
  %v757 = vmul.f32 %v641, %v741
  %v758 = vmul.f32 %v642, %v742
  %v759 = vmul.f32 %v643, %v743
  %v760 = vmul.f32 %v644, %v744
  %v761 = vmul.f32 %v645, %v745
  %v762 = vmul.f32 %v646, %v746
  %v763 = vmul.f32 %v647, %v747
  %v764 = vmul.f32 %v648, %v748
  %v765 = vmul.f32 %v649, %v749
  %v766 = vmul.f32 %v650, %v750
  %v767 = vmul.f32 %v651, %v751
  %v768 = vmul.f32 %v652, %v752
  %v769 = vmul.f32 %v653, %v753
  %v770 = vmul.f32 %v654, %v754
  %v771 = vmul.f32 %v655, %v755
  %v772 = vsel %vm658, %v756, %v640
  %v773 = vsel %vm658, %v757, %v641
  %v774 = vsel %vm658, %v758, %v642
  %v775 = vsel %vm658, %v759, %v643
  %v776 = vsel %vm658, %v760, %v644
  %v777 = vsel %vm658, %v761, %v645
  %v778 = vsel %vm658, %v762, %v646
  %v779 = vsel %vm658, %v763, %v647
  %v780 = vsel %vm658, %v764, %v648
  %v781 = vsel %vm658, %v765, %v649
  %v782 = vsel %vm658, %v766, %v650
  %v783 = vsel %vm658, %v767, %v651
  %v784 = vsel %vm658, %v768, %v652
  %v785 = vsel %vm658, %v769, %v653
  %v786 = vsel %vm658, %v770, %v654
  %v787 = vsel %vm658, %v771, %v655
  %788 = vst.msk [vmem:[%s9] sm:$0xff] %vm691, %v772
  %789 = vst.msk [vmem:[%s9 + $0x8] sm:$0xff] %vm691, %v773
  %790 = vst.msk [vmem:[%s9 + $0x10] sm:$0xff] %vm691, %v774
  %791 = vst.msk [vmem:[%s9 + $0x18] sm:$0xff] %vm691, %v775
  %792 = vst.msk [vmem:[%s9 + $0x20] sm:$0xff] %vm691, %v776
  %793 = vst.msk [vmem:[%s9 + $0x28] sm:$0xff] %vm691, %v777
  %794 = vst.msk [vmem:[%s9 + $0x30] sm:$0xff] %vm691, %v778
  %795 = vst.msk [vmem:[%s9 + $0x38] sm:$0xff] %vm691, %v779
  %796 = vst.msk [vmem:[%s9 + $0x40] sm:$0xff] %vm691, %v780
  %797 = vst.msk [vmem:[%s9 + $0x48] sm:$0xff] %vm691, %v781
  %798 = vst.msk [vmem:[%s9 + $0x50] sm:$0xff] %vm691, %v782
  %799 = vst.msk [vmem:[%s9 + $0x58] sm:$0xff] %vm691, %v783
  %800 = vst.msk [vmem:[%s9 + $0x60] sm:$0xff] %vm691, %v784
  %801 = vst.msk [vmem:[%s9 + $0x68] sm:$0xff] %vm691, %v785
  %802 = vst.msk [vmem:[%s9 + $0x70] sm:$0xff] %vm691, %v786
  %803 = vst.msk [vmem:[%s9 + $0x78] sm:$0xff] %vm691, %v787
  // Predicated region
  $region38: #{votenet_decoder_forward.2} parent=0 // pred_check
    _
  $region39: #{votenet_decoder_forward.2} parent=0 // pred_check_branch
    %805 = sbr.rel (0) target = $region41
  $region40: #{votenet_decoder_forward.2} parent=0 // pred_region
    _
  $region41: #{votenet_decoder_forward.2} parent=0 // pred_fallthru
    _
  // Predicated region
  $region42: #{votenet_decoder_forward.2} parent=0 // pred_check
    _
  $region43: #{votenet_decoder_forward.2} parent=0 // pred_check_branch
    %807 = sbr.rel (0) target = $region45
  $region44: #{votenet_decoder_forward.2} parent=0 // pred_region
    _
  $region45: #{votenet_decoder_forward.2} parent=0 // pred_fallthru
    _

// kernel: votenet_decoder_forward.3
$region0: #{votenet_decoder_forward.3}
  #allocation0 [shape = 'u32[]', space=smem, size = 0x4, offset = 0x4, fixed_abs, tag = 'smem constant byte address 0x4 - core index']
  #allocation1 [shape = 'u32[144,128]{1,0:T(1,128)}', space=vmem, size = 0x12000, scoped, tag = 'internal scratch']
  %s0 = inlined_call_operand.vmem [shape: bf16[2,128,35], index: 0, kind: input, shape index: {}]
  %s1 = inlined_call_operand.vmem [shape: bf16[35,128], index: 1, kind: input, shape index: {}]
  %s2 = inlined_call_operand.vmem [shape: f32[1,128], index: 2, kind: input, shape index: {}]
  %s3 = inlined_call_operand.vmem [shape: f32[1,128], index: 3, kind: input, shape index: {}]
  %s4 = inlined_call_operand.vmem [shape: bf16[128,128], index: 4, kind: input, shape index: {}]
  %s5 = inlined_call_operand.vmem [shape: f32[1,128], index: 5, kind: input, shape index: {}]
  %s6 = inlined_call_operand.vmem [shape: f32[1,128], index: 6, kind: input, shape index: {}]
  %s7 = inlined_call_operand.vmem [shape: bf16[128,32], index: 7, kind: input, shape index: {}]
  %s8 = inlined_call_operand.vmem [shape: f32[1,32], index: 8, kind: input, shape index: {}]
  %s9 = inlined_call_operand.vmem [shape: f32[1,32], index: 9, kind: input, shape index: {}]
  %s10 = inlined_call_operand.hbm [shape: f32[2,16,32], index: 10, kind: output, shape index: {}]
  %s11 = sld [smem:[#allocation0]]
  $region73: #{votenet_decoder_forward.3} parent=0
    _
  %s13 = ssub.s32 1, %s11
  %s14 = scalar_select 0, %s13, %s11
  $region1: #{votenet_decoder_forward.3} parent=0
    #allocation2 [shape = 'u8[16384]{0}', space=vmem, size = 0x4000, scoped, tag = 'output window, operand 0']
    #allocation3 [shape = 's32[2]{0}', space=sflag, size = 0x8, scoped, tag = 'scoped memory for votenet_decoder_forward.3']
    %15 = vsyncpa [#allocation3], 0
    %s16 = scalar_lea.sflag [#allocation3], 1
    %17 = vsyncpa %s16, 0
    loop: start=0, step=1, limit=4
    $region2: #{votenet_decoder_forward.3} parent=1 // loop_pre_header
      _
    $region3: #{votenet_decoder_forward.3} parent=1 // loop_header
      %s19 = sphi 0, %s23
      %p20 = scmp.ge.s32.totalorder %s19, 4
      %s29 = sphi 0, %s31
      %s32 = sphi 0, %s29
      %s33 = sphi 0, %s32
      %s49 = sphi 0, %s33
      %s53 = sphi 0, %s53
      %s55 = sphi 0, %s53
      %s56 = sphi 0, %s55
      %s70 = sphi 0, %s56
      %s74 = sphi 0, %s74
      %s76 = sphi 0, %s74
      %s77 = sphi 0, %s76
      %s91 = sphi 0, %s77
      %s95 = sphi 0, %s95
      %s97 = sphi 0, %s95
      %s98 = sphi 0, %s97
      %s112 = sphi 0, %s98
      %s116 = sphi 0, %s116
      %s118 = sphi 0, %s116
      %s119 = sphi 0, %s118
      %s133 = sphi 0, %s119
      %s137 = sphi 0, %s137
      %s139 = sphi 0, %s137
      %s140 = sphi 0, %s139
      %s154 = sphi 0, %s140
      %s158 = sphi 0, %s158
      %s160 = sphi 0, %s158
      %s161 = sphi 0, %s160
      %s175 = sphi 0, %s161
      %s179 = sphi 0, %s179
      %s181 = sphi 0, %s179
      %s182 = sphi 0, %s181
      %s196 = sphi 0, %s182
      %s200 = sphi 0, %s200
      %s202 = sphi 0, %s200
      %s203 = sphi 0, %s202
      %s217 = sphi 0, %s203
      %s221 = sphi 0, %s221
      %s223 = sphi 0, %s221
      %s224 = sphi 0, %s223
      %s238 = sphi 0, %s224
      %s244 = sphi 0, %s246
      %s247 = sphi 0, %s244
      %s248 = sphi 0, %s247
      %s264 = sphi 0, %s248
    $region4: #{votenet_decoder_forward.3} parent=1 // loop_header_branch
      %22 = sbr.rel (%p20) target = $region8
    $region5: #{votenet_decoder_forward.3} parent=1 // loop_body
      %s24 = ssub.s32 %s19, 1
      %s25 = ssub.s32 %s19, 2
      %s26 = sadd.s32 %s19, 1
      %s27 = ssub.s32 %s19, %s26
      %p28 = scmp.eq.s32.totalorder %s27, 0
      %s30 = sadd.s32 %s29, 1
      %s31 = scalar_select %p28, %s29, %s30
      %p34 = pneg %p28
      %p35 = scmp.eq.s32.totalorder %s19, 1
      %p36 = por %p34, %p35
      %p37 = scmp.ne.s32.totalorder %s29, %s32
      %p38 = scmp.eq.s32.totalorder %s19, 0
      %p39 = por %p37, %p38
      %p40 = scmp.ne.s32.totalorder %s29, %s32
      %p41 = scmp.eq.s32.totalorder %s24, 1
      %p42 = por %p40, %p41
      %p43 = scmp.ne.s32.totalorder %s32, %s33
      %p44 = scmp.eq.s32.totalorder %s24, 0
      %p45 = por %p43, %p44
      %p46 = scmp.ne.s32.totalorder %s32, %s33
      %p47 = scmp.eq.s32.totalorder %s25, 1
      %p48 = por %p46, %p47
      %p50 = scmp.ne.s32.totalorder %s33, %s49
      %p51 = scmp.eq.s32.totalorder %s25, 0
      %p52 = por %p50, %p51
      %s54 = sadd.s32 %s53, 1
      %p57 = scmp.eq.s32.totalorder %s19, 1
      %p58 = scmp.ne.s32.totalorder %s53, %s55
      %p59 = scmp.eq.s32.totalorder %s19, 0
      %p60 = por %p58, %p59
      %p61 = scmp.ne.s32.totalorder %s53, %s55
      %p62 = scmp.eq.s32.totalorder %s24, 1
      %p63 = por %p61, %p62
      %p64 = scmp.ne.s32.totalorder %s55, %s56
      %p65 = scmp.eq.s32.totalorder %s24, 0
      %p66 = por %p64, %p65
      %p67 = scmp.ne.s32.totalorder %s55, %s56
      %p68 = scmp.eq.s32.totalorder %s25, 1
      %p69 = por %p67, %p68
      %p71 = scmp.ne.s32.totalorder %s56, %s70
      %p72 = scmp.eq.s32.totalorder %s25, 0
      %p73 = por %p71, %p72
      %s75 = sadd.s32 %s74, 1
      %p78 = scmp.eq.s32.totalorder %s19, 1
      %p79 = scmp.ne.s32.totalorder %s74, %s76
      %p80 = scmp.eq.s32.totalorder %s19, 0
      %p81 = por %p79, %p80
      %p82 = scmp.ne.s32.totalorder %s74, %s76
      %p83 = scmp.eq.s32.totalorder %s24, 1
      %p84 = por %p82, %p83
      %p85 = scmp.ne.s32.totalorder %s76, %s77
      %p86 = scmp.eq.s32.totalorder %s24, 0
      %p87 = por %p85, %p86
      %p88 = scmp.ne.s32.totalorder %s76, %s77
      %p89 = scmp.eq.s32.totalorder %s25, 1
      %p90 = por %p88, %p89
      %p92 = scmp.ne.s32.totalorder %s77, %s91
      %p93 = scmp.eq.s32.totalorder %s25, 0
      %p94 = por %p92, %p93
      %s96 = sadd.s32 %s95, 1
      %p99 = scmp.eq.s32.totalorder %s19, 1
      %p100 = scmp.ne.s32.totalorder %s95, %s97
      %p101 = scmp.eq.s32.totalorder %s19, 0
      %p102 = por %p100, %p101
      %p103 = scmp.ne.s32.totalorder %s95, %s97
      %p104 = scmp.eq.s32.totalorder %s24, 1
      %p105 = por %p103, %p104
      %p106 = scmp.ne.s32.totalorder %s97, %s98
      %p107 = scmp.eq.s32.totalorder %s24, 0
      %p108 = por %p106, %p107
      %p109 = scmp.ne.s32.totalorder %s97, %s98
      %p110 = scmp.eq.s32.totalorder %s25, 1
      %p111 = por %p109, %p110
      %p113 = scmp.ne.s32.totalorder %s98, %s112
      %p114 = scmp.eq.s32.totalorder %s25, 0
      %p115 = por %p113, %p114
      %s117 = sadd.s32 %s116, 1
      %p120 = scmp.eq.s32.totalorder %s19, 1
      %p121 = scmp.ne.s32.totalorder %s116, %s118
      %p122 = scmp.eq.s32.totalorder %s19, 0
      %p123 = por %p121, %p122
      %p124 = scmp.ne.s32.totalorder %s116, %s118
      %p125 = scmp.eq.s32.totalorder %s24, 1
      %p126 = por %p124, %p125
      %p127 = scmp.ne.s32.totalorder %s118, %s119
      %p128 = scmp.eq.s32.totalorder %s24, 0
      %p129 = por %p127, %p128
      %p130 = scmp.ne.s32.totalorder %s118, %s119
      %p131 = scmp.eq.s32.totalorder %s25, 1
      %p132 = por %p130, %p131
      %p134 = scmp.ne.s32.totalorder %s119, %s133
      %p135 = scmp.eq.s32.totalorder %s25, 0
      %p136 = por %p134, %p135
      %s138 = sadd.s32 %s137, 1
      %p141 = scmp.eq.s32.totalorder %s19, 1
      %p142 = scmp.ne.s32.totalorder %s137, %s139
      %p143 = scmp.eq.s32.totalorder %s19, 0
      %p144 = por %p142, %p143
      %p145 = scmp.ne.s32.totalorder %s137, %s139
      %p146 = scmp.eq.s32.totalorder %s24, 1
      %p147 = por %p145, %p146
      %p148 = scmp.ne.s32.totalorder %s139, %s140
      %p149 = scmp.eq.s32.totalorder %s24, 0
      %p150 = por %p148, %p149
      %p151 = scmp.ne.s32.totalorder %s139, %s140
      %p152 = scmp.eq.s32.totalorder %s25, 1
      %p153 = por %p151, %p152
      %p155 = scmp.ne.s32.totalorder %s140, %s154
      %p156 = scmp.eq.s32.totalorder %s25, 0
      %p157 = por %p155, %p156
      %s159 = sadd.s32 %s158, 1
      %p162 = scmp.eq.s32.totalorder %s19, 1
      %p163 = scmp.ne.s32.totalorder %s158, %s160
      %p164 = scmp.eq.s32.totalorder %s19, 0
      %p165 = por %p163, %p164
      %p166 = scmp.ne.s32.totalorder %s158, %s160
      %p167 = scmp.eq.s32.totalorder %s24, 1
      %p168 = por %p166, %p167
      %p169 = scmp.ne.s32.totalorder %s160, %s161
      %p170 = scmp.eq.s32.totalorder %s24, 0
      %p171 = por %p169, %p170
      %p172 = scmp.ne.s32.totalorder %s160, %s161
      %p173 = scmp.eq.s32.totalorder %s25, 1
      %p174 = por %p172, %p173
      %p176 = scmp.ne.s32.totalorder %s161, %s175
      %p177 = scmp.eq.s32.totalorder %s25, 0
      %p178 = por %p176, %p177
      %s180 = sadd.s32 %s179, 1
      %p183 = scmp.eq.s32.totalorder %s19, 1
      %p184 = scmp.ne.s32.totalorder %s179, %s181
      %p185 = scmp.eq.s32.totalorder %s19, 0
      %p186 = por %p184, %p185
      %p187 = scmp.ne.s32.totalorder %s179, %s181
      %p188 = scmp.eq.s32.totalorder %s24, 1
      %p189 = por %p187, %p188
      %p190 = scmp.ne.s32.totalorder %s181, %s182
      %p191 = scmp.eq.s32.totalorder %s24, 0
      %p192 = por %p190, %p191
      %p193 = scmp.ne.s32.totalorder %s181, %s182
      %p194 = scmp.eq.s32.totalorder %s25, 1
      %p195 = por %p193, %p194
      %p197 = scmp.ne.s32.totalorder %s182, %s196
      %p198 = scmp.eq.s32.totalorder %s25, 0
      %p199 = por %p197, %p198
      %s201 = sadd.s32 %s200, 1
      %p204 = scmp.eq.s32.totalorder %s19, 1
      %p205 = scmp.ne.s32.totalorder %s200, %s202
      %p206 = scmp.eq.s32.totalorder %s19, 0
      %p207 = por %p205, %p206
      %p208 = scmp.ne.s32.totalorder %s200, %s202
      %p209 = scmp.eq.s32.totalorder %s24, 1
      %p210 = por %p208, %p209
      %p211 = scmp.ne.s32.totalorder %s202, %s203
      %p212 = scmp.eq.s32.totalorder %s24, 0
      %p213 = por %p211, %p212
      %p214 = scmp.ne.s32.totalorder %s202, %s203
      %p215 = scmp.eq.s32.totalorder %s25, 1
      %p216 = por %p214, %p215
      %p218 = scmp.ne.s32.totalorder %s203, %s217
      %p219 = scmp.eq.s32.totalorder %s25, 0
      %p220 = por %p218, %p219
      %s222 = sadd.s32 %s221, 1
      %p225 = scmp.eq.s32.totalorder %s19, 1
      %p226 = scmp.ne.s32.totalorder %s221, %s223
      %p227 = scmp.eq.s32.totalorder %s19, 0
      %p228 = por %p226, %p227
      %p229 = scmp.ne.s32.totalorder %s221, %s223
      %p230 = scmp.eq.s32.totalorder %s24, 1
      %p231 = por %p229, %p230
      %p232 = scmp.ne.s32.totalorder %s223, %s224
      %p233 = scmp.eq.s32.totalorder %s24, 0
      %p234 = por %p232, %p233
      %p235 = scmp.ne.s32.totalorder %s223, %s224
      %p236 = scmp.eq.s32.totalorder %s25, 1
      %p237 = por %p235, %p236
      %p239 = scmp.ne.s32.totalorder %s224, %s238
      %p240 = scmp.eq.s32.totalorder %s25, 0
      %p241 = por %p239, %p240
      %s242 = ssub.s32 %s19, %s26
      %p243 = scmp.eq.s32.totalorder %s242, 0
      %s245 = sadd.s32 %s244, 1
      %s246 = scalar_select %p243, %s244, %s245
      %p249 = pneg %p243
      %p250 = scmp.eq.s32.totalorder %s19, 1
      %p251 = por %p249, %p250
      %p252 = scmp.ne.s32.totalorder %s244, %s247
      %p253 = scmp.eq.s32.totalorder %s19, 0
      %p254 = por %p252, %p253
      %p255 = scmp.ne.s32.totalorder %s244, %s247
      %p256 = scmp.eq.s32.totalorder %s24, 1
      %p257 = por %p255, %p256
      %p258 = scmp.ne.s32.totalorder %s247, %s248
      %p259 = scmp.eq.s32.totalorder %s24, 0
      %p260 = por %p258, %p259
      %p261 = scmp.ne.s32.totalorder %s247, %s248
      %p262 = scmp.eq.s32.totalorder %s25, 1
      %p263 = por %p261, %p262
      %p265 = scmp.ne.s32.totalorder %s248, %s264
      %p266 = scmp.eq.s32.totalorder %s25, 0
      %p267 = por %p265, %p266
      %p268 = scmp.le.s32.totalorder 1, %s19
      %p269 = scmp.lt.s32.totalorder %s19, 3
      %p270 = pnand %p268, %p269
      %p271 = pneg %p270
      // Predicated region
      $region9: #{votenet_decoder_forward.3} parent=5 // pred_check
        _
      $region10: #{votenet_decoder_forward.3} parent=5 // pred_check_branch
        %273 = sbr.rel (%p270) target = $region12
      $region11: #{votenet_decoder_forward.3} parent=5 // pred_region
        %s274 = ssub.s32 %s19, 1
        // Predicated region
        $region13: #{votenet_decoder_forward.3} parent=11 // pred_check
          %p275 = pneg %p66
        $region14: #{votenet_decoder_forward.3} parent=11 // pred_check_branch
          %277 = sbr.rel (%p275) target = $region16
        $region15: #{votenet_decoder_forward.3} parent=11 // pred_region
          _
        $region16: #{votenet_decoder_forward.3} parent=11 // pred_fallthru
          _
        // Predicated region
        $region17: #{votenet_decoder_forward.3} parent=11 // pred_check
          %p278 = pneg %p87
        $region18: #{votenet_decoder_forward.3} parent=11 // pred_check_branch
          %280 = sbr.rel (%p278) target = $region20
        $region19: #{votenet_decoder_forward.3} parent=11 // pred_region
          _
        $region20: #{votenet_decoder_forward.3} parent=11 // pred_fallthru
          _
        // Predicated region
        $region21: #{votenet_decoder_forward.3} parent=11 // pred_check
          %p281 = pneg %p108
        $region22: #{votenet_decoder_forward.3} parent=11 // pred_check_branch
          %283 = sbr.rel (%p281) target = $region24
        $region23: #{votenet_decoder_forward.3} parent=11 // pred_region
          _
        $region24: #{votenet_decoder_forward.3} parent=11 // pred_fallthru
          _
        // Predicated region
        $region25: #{votenet_decoder_forward.3} parent=11 // pred_check
          %p284 = pneg %p129
        $region26: #{votenet_decoder_forward.3} parent=11 // pred_check_branch
          %286 = sbr.rel (%p284) target = $region28
        $region27: #{votenet_decoder_forward.3} parent=11 // pred_region
          _
        $region28: #{votenet_decoder_forward.3} parent=11 // pred_fallthru
          _
        // Predicated region
        $region29: #{votenet_decoder_forward.3} parent=11 // pred_check
          %p287 = pneg %p150
        $region30: #{votenet_decoder_forward.3} parent=11 // pred_check_branch
          %289 = sbr.rel (%p287) target = $region32
        $region31: #{votenet_decoder_forward.3} parent=11 // pred_region
          _
        $region32: #{votenet_decoder_forward.3} parent=11 // pred_fallthru
          _
        // Predicated region
        $region33: #{votenet_decoder_forward.3} parent=11 // pred_check
          %p290 = pneg %p171
        $region34: #{votenet_decoder_forward.3} parent=11 // pred_check_branch
          %292 = sbr.rel (%p290) target = $region36
        $region35: #{votenet_decoder_forward.3} parent=11 // pred_region
          _
        $region36: #{votenet_decoder_forward.3} parent=11 // pred_fallthru
          _
        // Predicated region
        $region37: #{votenet_decoder_forward.3} parent=11 // pred_check
          %p293 = pneg %p192
        $region38: #{votenet_decoder_forward.3} parent=11 // pred_check_branch
          %295 = sbr.rel (%p293) target = $region40
        $region39: #{votenet_decoder_forward.3} parent=11 // pred_region
          _
        $region40: #{votenet_decoder_forward.3} parent=11 // pred_fallthru
          _
        // Predicated region
        $region41: #{votenet_decoder_forward.3} parent=11 // pred_check
          %p296 = pneg %p213
        $region42: #{votenet_decoder_forward.3} parent=11 // pred_check_branch
          %298 = sbr.rel (%p296) target = $region44
        $region43: #{votenet_decoder_forward.3} parent=11 // pred_region
          _
        $region44: #{votenet_decoder_forward.3} parent=11 // pred_fallthru
          _
        // Predicated region
        $region45: #{votenet_decoder_forward.3} parent=11 // pred_check
          %p299 = pneg %p234
        $region46: #{votenet_decoder_forward.3} parent=11 // pred_check_branch
          %301 = sbr.rel (%p299) target = $region48
        $region47: #{votenet_decoder_forward.3} parent=11 // pred_region
          _
        $region48: #{votenet_decoder_forward.3} parent=11 // pred_fallthru
          _
      $region12: #{votenet_decoder_forward.3} parent=5 // pred_fallthru
        _
      %p302 = scmp.lt.s32.totalorder %s19, 2
      // Predicated region
      $region49: #{votenet_decoder_forward.3} parent=5 // pred_check
        %p303 = pneg %p302
      $region50: #{votenet_decoder_forward.3} parent=5 // pred_check_branch
        %305 = sbr.rel (%p303) target = $region52
      $region51: #{votenet_decoder_forward.3} parent=5 // pred_region
        // Predicated region
        $region53: #{votenet_decoder_forward.3} parent=51 // pred_check
          %p306 = pneg %p39
        $region54: #{votenet_decoder_forward.3} parent=51 // pred_check_branch
          %308 = sbr.rel (%p306) target = $region56
        $region55: #{votenet_decoder_forward.3} parent=51 // pred_region
          %p309 = scmp.lt.s32.totalorder %s19, 1
          %s310 = scalar_select %p309, %s19, 1
          %s311 = smul.addr %s310, 16
          %s312 = smul.addr %s311, 4
          %s313 = scalar_lea.vmem %s0, %s312
        $region56: #{votenet_decoder_forward.3} parent=51 // pred_fallthru
          _
      $region52: #{votenet_decoder_forward.3} parent=5 // pred_fallthru
        _
      %p314 = scmp.le.s32.totalorder 1, %s19
      %p315 = scmp.lt.s32.totalorder %s19, 3
      %p316 = pnand %p314, %p315
      %p317 = pneg %p316
      // Predicated region
      $region57: #{votenet_decoder_forward.3} parent=5 // pred_check
        _
      $region58: #{votenet_decoder_forward.3} parent=5 // pred_check_branch
        %319 = sbr.rel (%p316) target = $region60
      $region59: #{votenet_decoder_forward.3} parent=5 // pred_region
        %s320 = ssub.s32 %s19, 1
        %p321 = scmp.lt.s32.totalorder %s24, 1
        %s322 = scalar_select %p321, %s24, 1
        %s323 = smul.addr %s322, 16
        %s324 = smul.addr %s323, 4
        %s325 = scalar_lea.vmem %s0, %s324
        %p326 = pneg %p45
        %p327 = pneg %p42
        %p328 = pneg %p66
        %p329 = pneg %p63
        %p330 = pneg %p87
        %p331 = pneg %p84
        %p332 = pneg %p108
        %p333 = pneg %p105
        %p334 = pneg %p129
        %p335 = pneg %p126
        %p336 = pneg %p150
        %p337 = pneg %p147
        %p338 = pneg %p171
        %p339 = pneg %p168
        %p340 = pneg %p192
        %p341 = pneg %p189
        %p342 = pneg %p213
        %p343 = pneg %p210
        %p344 = pneg %p234
        %p345 = pneg %p231
        %p346 = pneg %p260
        %p347 = pneg %p257
        %s348 = sand.u32 %s247, 1
        %s349 = scalar_lea.sflag [#allocation3], %s348
        %s350 = sand.u32 %s247, 1
        %s351 = smul.addr %s350, 16
        %s352 = scalar_lea.vmem [#allocation2], %s351
        %p353 = scmp.lt.s32.totalorder %s24, 1
        %s354 = scalar_select %p353, %s24, 1
        %s355 = smul.addr %s354, 16
        %s356 = smul.addr %s355, 4
        %s357 = scalar_lea.vmem %s0, %s356
        %v359 = vld [vmem:[%s357] sm:$0xf]
        %v360 = vld [vmem:[%s357 + $0x4] sm:$0xf]
        %v361 = vld [vmem:[%s357 + $0x8] sm:$0xf]
        %v362 = vld [vmem:[%s357 + $0xc] sm:$0xf]
        %v363 = vld [vmem:[%s357 + $0x10] sm:$0xf]
        %v364 = vld [vmem:[%s357 + $0x14] sm:$0xf]
        %v365 = vld [vmem:[%s357 + $0x18] sm:$0xf]
        %v366 = vld [vmem:[%s357 + $0x1c] sm:$0xf]
        %v367 = vld [vmem:[%s357 + $0x20] sm:$0xf]
        %v368 = vld [vmem:[%s357 + $0x24] sm:$0xf]
        %v369 = vld [vmem:[%s357 + $0x28] sm:$0xf]
        %v370 = vld [vmem:[%s357 + $0x2c] sm:$0xf]
        %v371 = vld [vmem:[%s357 + $0x30] sm:$0xf]
        %v372 = vld [vmem:[%s357 + $0x34] sm:$0xf]
        %v373 = vld [vmem:[%s357 + $0x38] sm:$0xf]
        %v374 = vld [vmem:[%s357 + $0x3c] sm:$0xf]
        %v375 = vld [vmem:[%s1] sm:$0xf]
        %v376 = vld [vmem:[%s1 + $0x4] sm:$0xf]
        %v377 = vld [vmem:[%s1 + $0x8] sm:$0xf]
        %v378 = vld [vmem:[%s1 + $0xc] sm:$0xf]
        %v379 = vld [vmem:[%s1 + $0x10] sm:$0x3]
        %v396 = vunpack.c.l.b16 %v359
        %v397 = vunpack.c.l.b16 %v360
        %v398 = vunpack.c.l.b16 %v361
        %v399 = vunpack.c.l.b16 %v362
        %v400 = vunpack.c.l.b16 %v363
        %v401 = vunpack.c.l.b16 %v364
        %v402 = vunpack.c.l.b16 %v365
        %v403 = vunpack.c.l.b16 %v366
        %v404 = vunpack.c.l.b16 %v367
        %v405 = vunpack.c.l.b16 %v368
        %v406 = vunpack.c.l.b16 %v369
        %v407 = vunpack.c.l.b16 %v370
        %v408 = vunpack.c.l.b16 %v371
        %v409 = vunpack.c.l.b16 %v372
        %v410 = vunpack.c.l.b16 %v373
        %v411 = vunpack.c.l.b16 %v374
        %v412 = vpack.c.b16 %v397, %v396
        %v413 = vpack.c.b16 %v399, %v398
        %v414 = vpack.c.b16 %v401, %v400
        %v415 = vpack.c.b16 %v403, %v402
        %v416 = vpack.c.b16 %v405, %v404
        %v417 = vpack.c.b16 %v407, %v406
        %v418 = vpack.c.b16 %v409, %v408
        %v419 = vpack.c.b16 %v411, %v410
        %v425 = vunpack.c.l.b16 %v375
        %v426 = vunpack.c.l.b16 %v376
        %v427 = vunpack.c.l.b16 %v377
        %v428 = vunpack.c.l.b16 %v378
        %v429 = vunpack.c.l.b16 %v379
        %v430 = vpack.c.b16 %v426, %v425
        %v431 = vpack.c.b16 %v428, %v427
        %v432 = vpack.c.b16 %v429, %v429
        %vm435 = vcmask 285696
        %v437 = vsel %vm435, %v412, 0
        %v440 = vsel %vm435, %v413, 0
        %v443 = vsel %vm435, %v414, 0
        %v446 = vsel %vm435, %v415, 0
        %v449 = vsel %vm435, %v416, 0
        %v452 = vsel %vm435, %v417, 0
        %v455 = vsel %vm435, %v418, 0
        %v458 = vsel %vm435, %v419, 0
        %vm460 = vcmask 1040384
        %vm461 = vcmask 1041408
        %v462 = vsel %vm460, 4294967295, 65535
        %v463 = vsel %vm461, %v462, 0
        %v465 = vand.u32 %v432, %v463
        %467 = vmatprep.subr.bf16.mxu0 0
        %468 = vmatpush1.bf16.msra.mxu0 0
        %469 = vmatprep.subr.bf16.mxu0 0
        %470 = vmatpush1.bf16.msra.mxu0 0
        %471 = vmatprep.subr.bf16.mxu0 0
        %472 = vmatpush1.bf16.msra.mxu0 0
        %473 = vmatprep.subr.bf16.mxu0 0
        %474 = vmatpush1.bf16.msra.mxu0 0
        %475 = vmatprep.subr.bf16.mxu0 0
        %476 = vmatpush1.bf16.msra.mxu0 0
        %477 = vmatprep.subr.bf16.mxu0 0
        %478 = vmatpush1.bf16.msra.mxu0 %v465
        %479 = vmatprep.subr.bf16.mxu0 0
        %480 = vmatpush1.bf16.msra.mxu0 %v431
        %481 = vmatprep.subr.bf16.mxu0 0
        %482 = vmatpush1.bf16.msra.mxu0 %v430
        %483 = vmatprep.subr.bf16.mxu0 0
        %484 = vmatpush2.bf16.msra.mxu0 0
        %485 = vmatprep.subr.bf16.mxu0 0
        %486 = vmatpush2.bf16.msra.mxu0 0
        %487 = vmatprep.subr.bf16.mxu0 0
        %488 = vmatpush2.bf16.msra.mxu0 0
        %489 = vmatprep.subr.bf16.mxu0 0
        %490 = vmatpush2.bf16.msra.mxu0 0
        %491 = vmatprep.subr.bf16.mxu0 0
        %492 = vmatpush2.bf16.msra.mxu0 0
        %493 = vmatprep.subr.bf16.mxu0 0
        %494 = vmatpush2.bf16.msra.mxu0 0
        %495 = vmatprep.subr.bf16.mxu0 0
        %496 = vmatpush2.bf16.msra.mxu0 0
        %497 = vmatprep.subr.bf16.mxu0 0
        %498 = vmatpush2.bf16.msra.mxu0 0
        %499 = vmatprep.mubr.bf16.mxu0 0
        %500 = vmatmul.mubr.bf16.gmra.mxu0 %v437
        %v501 = vpop.f32.mrf.mxu0
        %v502 = vadd.f32 0.0, %v501
        %v503 = vpop.f32.mrf.mxu0
        %v504 = vpop.f32.mrf.mxu0
        %v505 = vadd.f32 0.0, %v504
        %v506 = vpop.f32.mrf.mxu0
        %507 = vmatprep.mubr.bf16.mxu0 0
        %508 = vmatmul.mubr.bf16.gmra.mxu0 %v440
        %v509 = vpop.f32.mrf.mxu0
        %v510 = vadd.f32 0.0, %v509
        %v511 = vpop.f32.mrf.mxu0
        %v512 = vpop.f32.mrf.mxu0
        %v513 = vadd.f32 0.0, %v512
        %v514 = vpop.f32.mrf.mxu0
        %515 = vmatprep.mubr.bf16.mxu0 0
        %516 = vmatmul.mubr.bf16.gmra.mxu0 %v443
        %v517 = vpop.f32.mrf.mxu0
        %v518 = vadd.f32 0.0, %v517
        %v519 = vpop.f32.mrf.mxu0
        %v520 = vpop.f32.mrf.mxu0
        %v521 = vadd.f32 0.0, %v520
        %v522 = vpop.f32.mrf.mxu0
        %523 = vmatprep.mubr.bf16.mxu0 0
        %524 = vmatmul.mubr.bf16.gmra.mxu0 %v446
        %v525 = vpop.f32.mrf.mxu0
        %v526 = vadd.f32 0.0, %v525
        %v527 = vpop.f32.mrf.mxu0
        %v528 = vpop.f32.mrf.mxu0
        %v529 = vadd.f32 0.0, %v528
        %v530 = vpop.f32.mrf.mxu0
        %531 = vmatprep.mubr.bf16.mxu0 0
        %532 = vmatmul.mubr.bf16.gmra.mxu0 %v449
        %v533 = vpop.f32.mrf.mxu0
        %v534 = vadd.f32 0.0, %v533
        %v535 = vpop.f32.mrf.mxu0
        %v536 = vpop.f32.mrf.mxu0
        %v537 = vadd.f32 0.0, %v536
        %v538 = vpop.f32.mrf.mxu0
        %539 = vmatprep.mubr.bf16.mxu0 0
        %540 = vmatmul.mubr.bf16.gmra.mxu0 %v452
        %v541 = vpop.f32.mrf.mxu0
        %v542 = vadd.f32 0.0, %v541
        %v543 = vpop.f32.mrf.mxu0
        %v544 = vpop.f32.mrf.mxu0
        %v545 = vadd.f32 0.0, %v544
        %v546 = vpop.f32.mrf.mxu0
        %547 = vmatprep.mubr.bf16.mxu0 0
        %548 = vmatmul.mubr.bf16.gmra.mxu0 %v455
        %v549 = vpop.f32.mrf.mxu0
        %v550 = vadd.f32 0.0, %v549
        %v551 = vpop.f32.mrf.mxu0
        %v552 = vpop.f32.mrf.mxu0
        %v553 = vadd.f32 0.0, %v552
        %v554 = vpop.f32.mrf.mxu0
        %555 = vmatprep.mubr.bf16.mxu0 0
        %556 = vmatmul.mubr.bf16.gmra.mxu0 %v458
        %v557 = vpop.f32.mrf.mxu0
        %v558 = vadd.f32 0.0, %v557
        %v559 = vpop.f32.mrf.mxu0
        %v560 = vpop.f32.mrf.mxu0
        %v561 = vadd.f32 0.0, %v560
        %v562 = vpop.f32.mrf.mxu0
        %563 = vdwg.mxu0
        %v564 = vld [vmem:[%s2] sm:$0x1]
        %v566 = vlaneseq
        %v567 = vshrl.u32 %v566, 7
        %v568 = vsub.s32 0, %v567
        %v569 = vrot.slane %v564, %v568
        %v571 = vmul.f32 %v502, %v569
        %v572 = vmul.f32 %v505, %v569
        %v573 = vmul.f32 %v510, %v569
        %v574 = vmul.f32 %v513, %v569
        %v575 = vmul.f32 %v518, %v569
        %v576 = vmul.f32 %v521, %v569
        %v577 = vmul.f32 %v526, %v569
        %v578 = vmul.f32 %v529, %v569
        %v579 = vmul.f32 %v534, %v569
        %v580 = vmul.f32 %v537, %v569
        %v581 = vmul.f32 %v542, %v569
        %v582 = vmul.f32 %v545, %v569
        %v583 = vmul.f32 %v550, %v569
        %v584 = vmul.f32 %v553, %v569
        %v585 = vmul.f32 %v558, %v569
        %v586 = vmul.f32 %v561, %v569
        %v587 = vld [vmem:[%s3] sm:$0x1]
        %v589 = vlaneseq
        %v590 = vshrl.u32 %v589, 7
        %v591 = vsub.s32 0, %v590
        %v592 = vrot.slane %v587, %v591
        %v594 = vadd.f32 %v571, %v592
        %v595 = vadd.f32 %v572, %v592
        %v596 = vadd.f32 %v573, %v592
        %v597 = vadd.f32 %v574, %v592
        %v598 = vadd.f32 %v575, %v592
        %v599 = vadd.f32 %v576, %v592
        %v600 = vadd.f32 %v577, %v592
        %v601 = vadd.f32 %v578, %v592
        %v602 = vadd.f32 %v579, %v592
        %v603 = vadd.f32 %v580, %v592
        %v604 = vadd.f32 %v581, %v592
        %v605 = vadd.f32 %v582, %v592
        %v606 = vadd.f32 %v583, %v592
        %v607 = vadd.f32 %v584, %v592
        %v608 = vadd.f32 %v585, %v592
        %v609 = vadd.f32 %v586, %v592
        %v610 = vmax.f32 %v594, 0.0
        %v611 = vmax.f32 %v595, 0.0
        %v612 = vmax.f32 %v596, 0.0
        %v613 = vmax.f32 %v597, 0.0
        %v614 = vmax.f32 %v598, 0.0
        %v615 = vmax.f32 %v599, 0.0
        %v616 = vmax.f32 %v600, 0.0
        %v617 = vmax.f32 %v601, 0.0
        %v618 = vmax.f32 %v602, 0.0
        %v619 = vmax.f32 %v603, 0.0
        %v620 = vmax.f32 %v604, 0.0
        %v621 = vmax.f32 %v605, 0.0
        %v622 = vmax.f32 %v606, 0.0
        %v623 = vmax.f32 %v607, 0.0
        %v624 = vmax.f32 %v608, 0.0
        %v625 = vmax.f32 %v609, 0.0
        %v626 = vpack.c.bf16 %v611, %v610
        %v627 = vpack.c.bf16 %v613, %v612
        %v628 = vpack.c.bf16 %v615, %v614
        %v629 = vpack.c.bf16 %v617, %v616
        %v630 = vpack.c.bf16 %v619, %v618
        %v631 = vpack.c.bf16 %v621, %v620
        %v632 = vpack.c.bf16 %v623, %v622
        %v633 = vpack.c.bf16 %v625, %v624
        %v634 = vld [vmem:[%s4] sm:$0xf]
        %v635 = vld [vmem:[%s4 + $0x4] sm:$0xf]
        %v636 = vld [vmem:[%s4 + $0x8] sm:$0xf]
        %v637 = vld [vmem:[%s4 + $0xc] sm:$0xf]
        %v638 = vld [vmem:[%s4 + $0x10] sm:$0xf]
        %v639 = vld [vmem:[%s4 + $0x14] sm:$0xf]
        %v640 = vld [vmem:[%s4 + $0x18] sm:$0xf]
        %v641 = vld [vmem:[%s4 + $0x1c] sm:$0xf]
        %v642 = vld [vmem:[%s4 + $0x20] sm:$0xf]
        %v643 = vld [vmem:[%s4 + $0x24] sm:$0xf]
        %v644 = vld [vmem:[%s4 + $0x28] sm:$0xf]
        %v645 = vld [vmem:[%s4 + $0x2c] sm:$0xf]
        %v646 = vld [vmem:[%s4 + $0x30] sm:$0xf]
        %v647 = vld [vmem:[%s4 + $0x34] sm:$0xf]
        %v648 = vld [vmem:[%s4 + $0x38] sm:$0xf]
        %v649 = vld [vmem:[%s4 + $0x3c] sm:$0xf]
        %v666 = vunpack.c.l.b16 %v634
        %v667 = vunpack.c.l.b16 %v635
        %v668 = vunpack.c.l.b16 %v636
        %v669 = vunpack.c.l.b16 %v637
        %v670 = vunpack.c.l.b16 %v638
        %v671 = vunpack.c.l.b16 %v639
        %v672 = vunpack.c.l.b16 %v640
        %v673 = vunpack.c.l.b16 %v641
        %v674 = vunpack.c.l.b16 %v642
        %v675 = vunpack.c.l.b16 %v643
        %v676 = vunpack.c.l.b16 %v644
        %v677 = vunpack.c.l.b16 %v645
        %v678 = vunpack.c.l.b16 %v646
        %v679 = vunpack.c.l.b16 %v647
        %v680 = vunpack.c.l.b16 %v648
        %v681 = vunpack.c.l.b16 %v649
        %v682 = vpack.c.b16 %v667, %v666
        %v683 = vpack.c.b16 %v669, %v668
        %v684 = vpack.c.b16 %v671, %v670
        %v685 = vpack.c.b16 %v673, %v672
        %v686 = vpack.c.b16 %v675, %v674
        %v687 = vpack.c.b16 %v677, %v676
        %v688 = vpack.c.b16 %v679, %v678
        %v689 = vpack.c.b16 %v681, %v680
        %698 = vmatprep.subr.bf16.mxu0 0
        %699 = vmatpush1.bf16.msra.mxu0 %v689
        %700 = vmatprep.subr.bf16.mxu0 0
        %701 = vmatpush1.bf16.msra.mxu0 %v688
        %702 = vmatprep.subr.bf16.mxu0 0
        %703 = vmatpush1.bf16.msra.mxu0 %v687
        %704 = vmatprep.subr.bf16.mxu0 0
        %705 = vmatpush1.bf16.msra.mxu0 %v686
        %706 = vmatprep.subr.bf16.mxu0 0
        %707 = vmatpush1.bf16.msra.mxu0 %v685
        %708 = vmatprep.subr.bf16.mxu0 0
        %709 = vmatpush1.bf16.msra.mxu0 %v684
        %710 = vmatprep.subr.bf16.mxu0 0
        %711 = vmatpush1.bf16.msra.mxu0 %v683
        %712 = vmatprep.subr.bf16.mxu0 0
        %713 = vmatpush1.bf16.msra.mxu0 %v682
        %714 = vmatprep.subr.bf16.mxu0 0
        %715 = vmatpush2.bf16.msra.mxu0 0
        %716 = vmatprep.subr.bf16.mxu0 0
        %717 = vmatpush2.bf16.msra.mxu0 0
        %718 = vmatprep.subr.bf16.mxu0 0
        %719 = vmatpush2.bf16.msra.mxu0 0
        %720 = vmatprep.subr.bf16.mxu0 0
        %721 = vmatpush2.bf16.msra.mxu0 0
        %722 = vmatprep.subr.bf16.mxu0 0
        %723 = vmatpush2.bf16.msra.mxu0 0
        %724 = vmatprep.subr.bf16.mxu0 0
        %725 = vmatpush2.bf16.msra.mxu0 0
        %726 = vmatprep.subr.bf16.mxu0 0
        %727 = vmatpush2.bf16.msra.mxu0 0
        %728 = vmatprep.subr.bf16.mxu0 0
        %729 = vmatpush2.bf16.msra.mxu0 0
        %730 = vmatprep.mubr.bf16.mxu0 0
        %731 = vmatmul.mubr.bf16.gmra.mxu0 %v626
        %v732 = vpop.f32.mrf.mxu0
        %v733 = vadd.f32 0.0, %v732
        %v734 = vpop.f32.mrf.mxu0
        %v735 = vpop.f32.mrf.mxu0
        %v736 = vadd.f32 0.0, %v735
        %v737 = vpop.f32.mrf.mxu0
        %738 = vmatprep.mubr.bf16.mxu0 0
        %739 = vmatmul.mubr.bf16.gmra.mxu0 %v627
        %v740 = vpop.f32.mrf.mxu0
        %v741 = vadd.f32 0.0, %v740
        %v742 = vpop.f32.mrf.mxu0
        %v743 = vpop.f32.mrf.mxu0
        %v744 = vadd.f32 0.0, %v743
        %v745 = vpop.f32.mrf.mxu0
        %746 = vmatprep.mubr.bf16.mxu0 0
        %747 = vmatmul.mubr.bf16.gmra.mxu0 %v628
        %v748 = vpop.f32.mrf.mxu0
        %v749 = vadd.f32 0.0, %v748
        %v750 = vpop.f32.mrf.mxu0
        %v751 = vpop.f32.mrf.mxu0
        %v752 = vadd.f32 0.0, %v751
        %v753 = vpop.f32.mrf.mxu0
        %754 = vmatprep.mubr.bf16.mxu0 0
        %755 = vmatmul.mubr.bf16.gmra.mxu0 %v629
        %v756 = vpop.f32.mrf.mxu0
        %v757 = vadd.f32 0.0, %v756
        %v758 = vpop.f32.mrf.mxu0
        %v759 = vpop.f32.mrf.mxu0
        %v760 = vadd.f32 0.0, %v759
        %v761 = vpop.f32.mrf.mxu0
        %762 = vmatprep.mubr.bf16.mxu0 0
        %763 = vmatmul.mubr.bf16.gmra.mxu0 %v630
        %v764 = vpop.f32.mrf.mxu0
        %v765 = vadd.f32 0.0, %v764
        %v766 = vpop.f32.mrf.mxu0
        %v767 = vpop.f32.mrf.mxu0
        %v768 = vadd.f32 0.0, %v767
        %v769 = vpop.f32.mrf.mxu0
        %770 = vmatprep.mubr.bf16.mxu0 0
        %771 = vmatmul.mubr.bf16.gmra.mxu0 %v631
        %v772 = vpop.f32.mrf.mxu0
        %v773 = vadd.f32 0.0, %v772
        %v774 = vpop.f32.mrf.mxu0
        %v775 = vpop.f32.mrf.mxu0
        %v776 = vadd.f32 0.0, %v775
        %v777 = vpop.f32.mrf.mxu0
        %778 = vmatprep.mubr.bf16.mxu0 0
        %779 = vmatmul.mubr.bf16.gmra.mxu0 %v632
        %v780 = vpop.f32.mrf.mxu0
        %v781 = vadd.f32 0.0, %v780
        %v782 = vpop.f32.mrf.mxu0
        %v783 = vpop.f32.mrf.mxu0
        %v784 = vadd.f32 0.0, %v783
        %v785 = vpop.f32.mrf.mxu0
        %786 = vmatprep.mubr.bf16.mxu0 0
        %787 = vmatmul.mubr.bf16.gmra.mxu0 %v633
        %v788 = vpop.f32.mrf.mxu0
        %v789 = vadd.f32 0.0, %v788
        %v790 = vpop.f32.mrf.mxu0
        %v791 = vpop.f32.mrf.mxu0
        %v792 = vadd.f32 0.0, %v791
        %v793 = vpop.f32.mrf.mxu0
        %794 = vdwg.mxu0
        %v795 = vld [vmem:[%s5] sm:$0x1]
        %v797 = vlaneseq
        %v798 = vshrl.u32 %v797, 7
        %v799 = vsub.s32 0, %v798
        %v800 = vrot.slane %v795, %v799
        %v802 = vmul.f32 %v733, %v800
        %v803 = vmul.f32 %v736, %v800
        %v804 = vmul.f32 %v741, %v800
        %v805 = vmul.f32 %v744, %v800
        %v806 = vmul.f32 %v749, %v800
        %v807 = vmul.f32 %v752, %v800
        %v808 = vmul.f32 %v757, %v800
        %v809 = vmul.f32 %v760, %v800
        %v810 = vmul.f32 %v765, %v800
        %v811 = vmul.f32 %v768, %v800
        %v812 = vmul.f32 %v773, %v800
        %v813 = vmul.f32 %v776, %v800
        %v814 = vmul.f32 %v781, %v800
        %v815 = vmul.f32 %v784, %v800
        %v816 = vmul.f32 %v789, %v800
        %v817 = vmul.f32 %v792, %v800
        %v818 = vld [vmem:[%s6] sm:$0x1]
        %v820 = vlaneseq
        %v821 = vshrl.u32 %v820, 7
        %v822 = vsub.s32 0, %v821
        %v823 = vrot.slane %v818, %v822
        %v825 = vadd.f32 %v802, %v823
        %v826 = vadd.f32 %v803, %v823
        %v827 = vadd.f32 %v804, %v823
        %v828 = vadd.f32 %v805, %v823
        %v829 = vadd.f32 %v806, %v823
        %v830 = vadd.f32 %v807, %v823
        %v831 = vadd.f32 %v808, %v823
        %v832 = vadd.f32 %v809, %v823
        %v833 = vadd.f32 %v810, %v823
        %v834 = vadd.f32 %v811, %v823
        %v835 = vadd.f32 %v812, %v823
        %v836 = vadd.f32 %v813, %v823
        %v837 = vadd.f32 %v814, %v823
        %v838 = vadd.f32 %v815, %v823
        %v839 = vadd.f32 %v816, %v823
        %v840 = vadd.f32 %v817, %v823
        %v841 = vmax.f32 %v825, 0.0
        %v842 = vmax.f32 %v826, 0.0
        %v843 = vmax.f32 %v827, 0.0
        %v844 = vmax.f32 %v828, 0.0
        %v845 = vmax.f32 %v829, 0.0
        %v846 = vmax.f32 %v830, 0.0
        %v847 = vmax.f32 %v831, 0.0
        %v848 = vmax.f32 %v832, 0.0
        %v849 = vmax.f32 %v833, 0.0
        %v850 = vmax.f32 %v834, 0.0
        %v851 = vmax.f32 %v835, 0.0
        %v852 = vmax.f32 %v836, 0.0
        %v853 = vmax.f32 %v837, 0.0
        %v854 = vmax.f32 %v838, 0.0
        %v855 = vmax.f32 %v839, 0.0
        %v856 = vmax.f32 %v840, 0.0
        %v857 = vpack.c.bf16 %v842, %v841
        %v858 = vpack.c.bf16 %v844, %v843
        %v859 = vpack.c.bf16 %v846, %v845
        %v860 = vpack.c.bf16 %v848, %v847
        %v861 = vpack.c.bf16 %v850, %v849
        %v862 = vpack.c.bf16 %v852, %v851
        %v863 = vpack.c.bf16 %v854, %v853
        %v864 = vpack.c.bf16 %v856, %v855
        %v865 = vld [vmem:[%s7] sm:$0xf]
        %v866 = vld [vmem:[%s7 + $0x4] sm:$0xf]
        %v867 = vld [vmem:[%s7 + $0x8] sm:$0xf]
        %v868 = vld [vmem:[%s7 + $0xc] sm:$0xf]
        %v869 = vld [vmem:[%s7 + $0x10] sm:$0xf]
        %v870 = vld [vmem:[%s7 + $0x14] sm:$0xf]
        %v871 = vld [vmem:[%s7 + $0x18] sm:$0xf]
        %v872 = vld [vmem:[%s7 + $0x1c] sm:$0xf]
        %v873 = vld [vmem:[%s7 + $0x20] sm:$0xf]
        %v874 = vld [vmem:[%s7 + $0x24] sm:$0xf]
        %v875 = vld [vmem:[%s7 + $0x28] sm:$0xf]
        %v876 = vld [vmem:[%s7 + $0x2c] sm:$0xf]
        %v877 = vld [vmem:[%s7 + $0x30] sm:$0xf]
        %v878 = vld [vmem:[%s7 + $0x34] sm:$0xf]
        %v879 = vld [vmem:[%s7 + $0x38] sm:$0xf]
        %v880 = vld [vmem:[%s7 + $0x3c] sm:$0xf]
        %v897 = vunpack.c.l.b16 %v865
        %v898 = vunpack.c.l.b16 %v866
        %v899 = vunpack.c.l.b16 %v867
        %v900 = vunpack.c.l.b16 %v868
        %v901 = vunpack.c.l.b16 %v869
        %v902 = vunpack.c.l.b16 %v870
        %v903 = vunpack.c.l.b16 %v871
        %v904 = vunpack.c.l.b16 %v872
        %v905 = vunpack.c.l.b16 %v873
        %v906 = vunpack.c.l.b16 %v874
        %v907 = vunpack.c.l.b16 %v875
        %v908 = vunpack.c.l.b16 %v876
        %v909 = vunpack.c.l.b16 %v877
        %v910 = vunpack.c.l.b16 %v878
        %v911 = vunpack.c.l.b16 %v879
        %v912 = vunpack.c.l.b16 %v880
        %v913 = vpack.c.b16 %v898, %v897
        %v914 = vpack.c.b16 %v900, %v899
        %v915 = vpack.c.b16 %v902, %v901
        %v916 = vpack.c.b16 %v904, %v903
        %v917 = vpack.c.b16 %v906, %v905
        %v918 = vpack.c.b16 %v908, %v907
        %v919 = vpack.c.b16 %v910, %v909
        %v920 = vpack.c.b16 %v912, %v911
        %929 = vmatprep.subr.bf16.mxu0 0
        %930 = vmatpush1.bf16.msra.mxu0 %v920
        %931 = vmatprep.subr.bf16.mxu0 0
        %932 = vmatpush1.bf16.msra.mxu0 %v919
        %933 = vmatprep.subr.bf16.mxu0 0
        %934 = vmatpush1.bf16.msra.mxu0 %v918
        %935 = vmatprep.subr.bf16.mxu0 0
        %936 = vmatpush1.bf16.msra.mxu0 %v917
        %937 = vmatprep.subr.bf16.mxu0 0
        %938 = vmatpush1.bf16.msra.mxu0 %v916
        %939 = vmatprep.subr.bf16.mxu0 0
        %940 = vmatpush1.bf16.msra.mxu0 %v915
        %941 = vmatprep.subr.bf16.mxu0 0
        %942 = vmatpush1.bf16.msra.mxu0 %v914
        %943 = vmatprep.subr.bf16.mxu0 0
        %944 = vmatpush1.bf16.msra.mxu0 %v913
        %945 = vmatprep.subr.bf16.mxu0 0
        %946 = vmatpush2.bf16.msra.mxu0 0
        %947 = vmatprep.subr.bf16.mxu0 0
        %948 = vmatpush2.bf16.msra.mxu0 0
        %949 = vmatprep.subr.bf16.mxu0 0
        %950 = vmatpush2.bf16.msra.mxu0 0
        %951 = vmatprep.subr.bf16.mxu0 0
        %952 = vmatpush2.bf16.msra.mxu0 0
        %953 = vmatprep.subr.bf16.mxu0 0
        %954 = vmatpush2.bf16.msra.mxu0 0
        %955 = vmatprep.subr.bf16.mxu0 0
        %956 = vmatpush2.bf16.msra.mxu0 0
        %957 = vmatprep.subr.bf16.mxu0 0
        %958 = vmatpush2.bf16.msra.mxu0 0
        %959 = vmatprep.subr.bf16.mxu0 0
        %960 = vmatpush2.bf16.msra.mxu0 0
        %961 = vmatprep.mubr.bf16.mxu0 0
        %962 = vmatmul.mubr.bf16.gmra.mxu0 %v857
        %v963 = vpop.f32.mrf.mxu0
        %v964 = vadd.f32 0.0, %v963
        %v965 = vpop.f32.mrf.mxu0
        %v966 = vpop.f32.mrf.mxu0
        %v967 = vadd.f32 0.0, %v966
        %v968 = vpop.f32.mrf.mxu0
        %969 = vmatprep.mubr.bf16.mxu0 0
        %970 = vmatmul.mubr.bf16.gmra.mxu0 %v858
        %v971 = vpop.f32.mrf.mxu0
        %v972 = vadd.f32 0.0, %v971
        %v973 = vpop.f32.mrf.mxu0
        %v974 = vpop.f32.mrf.mxu0
        %v975 = vadd.f32 0.0, %v974
        %v976 = vpop.f32.mrf.mxu0
        %977 = vmatprep.mubr.bf16.mxu0 0
        %978 = vmatmul.mubr.bf16.gmra.mxu0 %v859
        %v979 = vpop.f32.mrf.mxu0
        %v980 = vadd.f32 0.0, %v979
        %v981 = vpop.f32.mrf.mxu0
        %v982 = vpop.f32.mrf.mxu0
        %v983 = vadd.f32 0.0, %v982
        %v984 = vpop.f32.mrf.mxu0
        %985 = vmatprep.mubr.bf16.mxu0 0
        %986 = vmatmul.mubr.bf16.gmra.mxu0 %v860
        %v987 = vpop.f32.mrf.mxu0
        %v988 = vadd.f32 0.0, %v987
        %v989 = vpop.f32.mrf.mxu0
        %v990 = vpop.f32.mrf.mxu0
        %v991 = vadd.f32 0.0, %v990
        %v992 = vpop.f32.mrf.mxu0
        %993 = vmatprep.mubr.bf16.mxu0 0
        %994 = vmatmul.mubr.bf16.gmra.mxu0 %v861
        %v995 = vpop.f32.mrf.mxu0
        %v996 = vadd.f32 0.0, %v995
        %v997 = vpop.f32.mrf.mxu0
        %v998 = vpop.f32.mrf.mxu0
        %v999 = vadd.f32 0.0, %v998
        %v1000 = vpop.f32.mrf.mxu0
        %1001 = vmatprep.mubr.bf16.mxu0 0
        %1002 = vmatmul.mubr.bf16.gmra.mxu0 %v862
        %v1003 = vpop.f32.mrf.mxu0
        %v1004 = vadd.f32 0.0, %v1003
        %v1005 = vpop.f32.mrf.mxu0
        %v1006 = vpop.f32.mrf.mxu0
        %v1007 = vadd.f32 0.0, %v1006
        %v1008 = vpop.f32.mrf.mxu0
        %1009 = vmatprep.mubr.bf16.mxu0 0
        %1010 = vmatmul.mubr.bf16.gmra.mxu0 %v863
        %v1011 = vpop.f32.mrf.mxu0
        %v1012 = vadd.f32 0.0, %v1011
        %v1013 = vpop.f32.mrf.mxu0
        %v1014 = vpop.f32.mrf.mxu0
        %v1015 = vadd.f32 0.0, %v1014
        %v1016 = vpop.f32.mrf.mxu0
        %1017 = vmatprep.mubr.bf16.mxu0 0
        %1018 = vmatmul.mubr.bf16.gmra.mxu0 %v864
        %v1019 = vpop.f32.mrf.mxu0
        %v1020 = vadd.f32 0.0, %v1019
        %v1021 = vpop.f32.mrf.mxu0
        %v1022 = vpop.f32.mrf.mxu0
        %v1023 = vadd.f32 0.0, %v1022
        %v1024 = vpop.f32.mrf.mxu0
        %1025 = vdwg.mxu0
        %v1026 = vld [vmem:[%s8] sm:$0x1]
        %v1028 = vlaneseq
        %v1029 = vshrl.u32 %v1028, 7
        %v1030 = vsub.s32 0, %v1029
        %v1031 = vrot.slane %v1026, %v1030
        %v1033 = vmul.f32 %v964, %v1031
        %v1034 = vmul.f32 %v967, %v1031
        %v1035 = vmul.f32 %v972, %v1031
        %v1036 = vmul.f32 %v975, %v1031
        %v1037 = vmul.f32 %v980, %v1031
        %v1038 = vmul.f32 %v983, %v1031
        %v1039 = vmul.f32 %v988, %v1031
        %v1040 = vmul.f32 %v991, %v1031
        %v1041 = vmul.f32 %v996, %v1031
        %v1042 = vmul.f32 %v999, %v1031
        %v1043 = vmul.f32 %v1004, %v1031
        %v1044 = vmul.f32 %v1007, %v1031
        %v1045 = vmul.f32 %v1012, %v1031
        %v1046 = vmul.f32 %v1015, %v1031
        %v1047 = vmul.f32 %v1020, %v1031
        %v1048 = vmul.f32 %v1023, %v1031
        %v1049 = vld [vmem:[%s9] sm:$0x1]
        %v1051 = vlaneseq
        %v1052 = vshrl.u32 %v1051, 7
        %v1053 = vsub.s32 0, %v1052
        %v1054 = vrot.slane %v1049, %v1053
        %v1056 = vadd.f32 %v1033, %v1054
        %v1057 = vadd.f32 %v1034, %v1054
        %v1058 = vadd.f32 %v1035, %v1054
        %v1059 = vadd.f32 %v1036, %v1054
        %v1060 = vadd.f32 %v1037, %v1054
        %v1061 = vadd.f32 %v1038, %v1054
        %v1062 = vadd.f32 %v1039, %v1054
        %v1063 = vadd.f32 %v1040, %v1054
        %v1064 = vadd.f32 %v1041, %v1054
        %v1065 = vadd.f32 %v1042, %v1054
        %v1066 = vadd.f32 %v1043, %v1054
        %v1067 = vadd.f32 %v1044, %v1054
        %v1068 = vadd.f32 %v1045, %v1054
        %v1069 = vadd.f32 %v1046, %v1054
        %v1070 = vadd.f32 %v1047, %v1054
        %v1071 = vadd.f32 %v1048, %v1054
        %v1072 = vmax.f32 %v1056, 0.0
        %v1073 = vmax.f32 %v1057, 0.0
        %v1074 = vmax.f32 %v1058, 0.0
        %v1075 = vmax.f32 %v1059, 0.0
        %v1076 = vmax.f32 %v1060, 0.0
        %v1077 = vmax.f32 %v1061, 0.0
        %v1078 = vmax.f32 %v1062, 0.0
        %v1079 = vmax.f32 %v1063, 0.0
        %v1080 = vmax.f32 %v1064, 0.0
        %v1081 = vmax.f32 %v1065, 0.0
        %v1082 = vmax.f32 %v1066, 0.0
        %v1083 = vmax.f32 %v1067, 0.0
        %v1084 = vmax.f32 %v1068, 0.0
        %v1085 = vmax.f32 %v1069, 0.0
        %v1086 = vmax.f32 %v1070, 0.0
        %v1087 = vmax.f32 %v1071, 0.0
        %v1088 = vmax.f32 %v1072, %v1074
        %v1089 = vmax.f32 %v1073, %v1075
        %v1090 = vmax.f32 %v1088, %v1076
        %v1091 = vmax.f32 %v1089, %v1077
        %v1092 = vmax.f32 %v1090, %v1078
        %v1093 = vmax.f32 %v1091, %v1079
        %v1094 = vmax.f32 %v1092, %v1080
        %v1095 = vmax.f32 %v1093, %v1081
        %v1096 = vmax.f32 %v1094, %v1082
        %v1097 = vmax.f32 %v1095, %v1083
        %v1098 = vmax.f32 %v1096, %v1084
        %v1099 = vmax.f32 %v1097, %v1085
        %v1100 = vmax.f32 %v1098, %v1086
        %v1101 = vmax.f32 %v1099, %v1087
        %vm1102 = vcmask 261120
        %1103 = vst.msk [vmem:[%s352] sm:$0xff] %vm1102, %v1100
        %1104 = vst.msk [vmem:[%s352 + $0x8] sm:$0xff] %vm1102, %v1101
        %s1105 = sand.u32 %s247, 1
        %s1106 = scalar_lea.sflag [#allocation3], %s1105
        %s1107 = sand.u32 %s247, 1
        %s1108 = smul.addr %s1107, 16
        %s1109 = scalar_lea.vmem [#allocation2], %s1108
        // Predicated region
        $region61: #{votenet_decoder_forward.3} parent=59 // pred_check
          %p1110 = pneg %p257
        $region62: #{votenet_decoder_forward.3} parent=59 // pred_check_branch
          %1112 = sbr.rel (%p1110) target = $region64
        $region63: #{votenet_decoder_forward.3} parent=59 // pred_region
          %s1114 = ssub.s32 256, 256
          %1115 = vsyncadd %s1106, %s1114
          %s1116 = smul.addr %s24, 2
          %s1117 = smul.addr %s1116, 128
          %s1118 = scalar_lea.hbm %s10, %s1117
          %s1119 = sshll.u32 %s1109, 4
          %s1120 = int_to_ptr.vmem [resolvable:$true] %s1119
          %1125 = dma.vmem_to_hbm [thread:$0]  %s1120, 256, %s1118, %s1106, 128, 128, 8
        $region64: #{votenet_decoder_forward.3} parent=59 // pred_fallthru
          _
      $region60: #{votenet_decoder_forward.3} parent=5 // pred_fallthru
        _
      %p1126 = scmp.le.s32.totalorder 2, %s19
      // Predicated region
      $region65: #{votenet_decoder_forward.3} parent=5 // pred_check
        %p1127 = pneg %p1126
      $region66: #{votenet_decoder_forward.3} parent=5 // pred_check_branch
        %1129 = sbr.rel (%p1127) target = $region68
      $region67: #{votenet_decoder_forward.3} parent=5 // pred_region
        %s1130 = ssub.s32 %s19, 2
        // Predicated region
        $region69: #{votenet_decoder_forward.3} parent=67 // pred_check
          %p1131 = pneg %p263
        $region70: #{votenet_decoder_forward.3} parent=67 // pred_check_branch
          %1133 = sbr.rel (%p1131) target = $region72
        $region71: #{votenet_decoder_forward.3} parent=67 // pred_region
          %s1134 = sand.u32 %s248, 1
          %s1135 = scalar_lea.sflag [#allocation3], %s1134
          %s1136 = sand.u32 %s248, 1
          %s1137 = smul.addr %s1136, 16
          %s1138 = scalar_lea.vmem [#allocation2], %s1137
          %1139 = dma.done %s1135, 256
        $region72: #{votenet_decoder_forward.3} parent=67 // pred_fallthru
          _
      $region68: #{votenet_decoder_forward.3} parent=5 // pred_fallthru
        _
    $region6: #{votenet_decoder_forward.3} parent=1 // loop_footer
      %s23 = sadd.s32 1, %s19
    $region7: #{votenet_decoder_forward.3} parent=1 // loop_footer_branch
      %18 = sbr.rel target = $region3
    $region8: #{votenet_decoder_forward.3} parent=1 // loop_exit
      _
    %1140 = vsyncpa [#allocation3], 1
    %s1141 = scalar_lea.sflag [#allocation3], 1
    %1142 = vsyncpa %s1141, 1

</llo_original>
